<compile_context>
chip_gen: v5e
topology: v5e:2x2
jax: 0.10.0
libtpu: 0.0.40
codegen_flags: <defaults>
</compile_context>

<pallas_src>
import functools

import jax
import jax.numpy as jnp
import numpy as np
from jax import lax
from jax.experimental import pallas as pl
from jax.experimental.pallas import tpu as pltpu

BN_EPS = 1e-5


# ---------------------------------------------------------------------------
# Fused Pallas kernel: conv3x3+BN+ReLU -> conv3x3+BN -> SE -> +shortcut -> ReLU
# ---------------------------------------------------------------------------
def _basic_block_kernel(x_ref, band1_ref, b1_ref, band2_ref, b2_ref,
                        wsc_ref, bsc_ref, sw1_ref, sw2_ref,
                        pool_ref, tile_ref, o_ref,
                        xp1_ref, xp2_ref, *, H, W, cout, proj):
    """One batch element per grid step.

    x_ref    : (H, W*cin)            input, channel-minor row layout
    band*    : (3, W*cin_l, W*cout)  banded 3x3 conv weights (BN folded), bf16
    b*_ref   : (1, W*cout)           folded conv-bias + BN shift, tiled over W
    wsc_ref  : (W*cin, W*cout)       block-diagonal folded 1x1 projection, bf16
    sw1/sw2  : SE FC weights         (cout, hidden), (hidden, cout)
    pool_ref : (W*cout, cout)        lane-folding matrix (global average pool)
    tile_ref : (cout, W*cout)        lane-tiling matrix (broadcast the SE gate)
    o_ref    : (H, W*cout)           output, lane-dense
    xp1/xp2  : VMEM scratch, 2 extra zero rows for vertical padding
    """
    f32 = jnp.float32
    bf16 = jnp.bfloat16

    # ---- vertical zero padding of the input, entirely inside VMEM ----
    xp1_ref[...] = jnp.zeros_like(xp1_ref)
    xp1_ref[pl.ds(1, H), :] = x_ref[...]

    # ---- conv1: 3x3 (padding=1) as 3 banded MXU matmuls + folded BN + ReLU ----
    y1 = jnp.zeros((H, W * cout), f32)
    for dy in range(3):
        y1 = y1 + jnp.dot(xp1_ref[pl.ds(dy, H), :].astype(bf16), band1_ref[dy],
                          preferred_element_type=f32)
    y1 = jnp.maximum(y1 + b1_ref[...], 0.0)

    # ---- conv2: 3x3 (padding=1) + folded BN (no ReLU) ----
    xp2_ref[...] = jnp.zeros_like(xp2_ref)
    xp2_ref[pl.ds(1, H), :] = y1
    y2 = jnp.zeros((H, W * cout), f32)
    for dy in range(3):
        y2 = y2 + jnp.dot(xp2_ref[pl.ds(dy, H), :].astype(bf16), band2_ref[dy],
                          preferred_element_type=f32)
    y2 = y2 + b2_ref[...]

    # ---- shortcut: 1x1 conv + folded BN (projection) or identity ----
    if proj:
        sc = jnp.dot(x_ref[...].astype(bf16), wsc_ref[...],
                     preferred_element_type=f32) + bsc_ref[...]
    else:
        sc = x_ref[...]                 # identity (cin == cout, stride == 1)

    # ---- SE block: global avg pool -> FC -> ReLU -> FC -> sigmoid ----
    colsum = jnp.sum(y2, axis=0, keepdims=True)                       # (1, W*cout)
    pooled = jnp.dot(colsum, pool_ref[...],
                     preferred_element_type=f32)                      # (1, cout)
    h = jnp.maximum(jnp.dot(pooled, sw1_ref[...],
                            preferred_element_type=f32), 0.0)         # (1, hidden)
    logits = jnp.dot(h, sw2_ref[...], preferred_element_type=f32)     # (1, cout)
    gate = pl.reciprocal(1.0 + jnp.exp(-logits), approx=True)         # sigmoid, EUP
    gate_w = jnp.dot(gate, tile_ref[...],
                     preferred_element_type=f32)                      # (1, W*cout)

    # ---- SE scale + residual add + final ReLU; single lane-dense store ----
    o_ref[...] = jnp.maximum(y2 * gate_w + sc, 0.0)


# ---------------------------------------------------------------------------
# Parameter folding (BN -> weights, 3x3 -> band matrices) — plain JAX, runs once
# ---------------------------------------------------------------------------
def _fold_bn(bn):
    scale = bn["gamma"] * lax.rsqrt(bn["var"] + BN_EPS)
    shift = bn["beta"] - bn["mean"] * scale
    return scale, shift


def _band_conv3x3(w_hwio, scale, W):
    """Fold the BN scale into a (3,3,Cin,Cout) weight and expand the dx taps
    into band matrices band[dy] of shape (W*Cin, W*Cout) so that a stride-1,
    padding=1 conv becomes:  out[h] = sum_dy xpad[h+dy] @ band[dy]."""
    _, _, cin, cout = w_hwio.shape
    wf = (w_hwio * scale).astype(jnp.float32)            # fold BN into weights
    bands = []
    for dy in range(3):
        b = jnp.zeros((W * cin, W * cout), jnp.float32)
        for dx in range(3):
            # shift[xi, xo] = 1  iff  xi == xo + dx - 1  (horizontal pad folded in)
            shift = jnp.eye(W, k=1 - dx, dtype=jnp.float32)
            b = b + jnp.kron(shift, wf[dy, dx])
        bands.append(b)
    return jnp.stack(bands).astype(jnp.bfloat16)


def fold_params(p, H, W, cin, cout):
    s1, sh1 = _fold_bn(p["bn1"])
    s2, sh2 = _fold_bn(p["bn2"])
    ssc, shsc = _fold_bn(p["bnsc"])
    eye_c = jnp.eye(cout, dtype=jnp.float32)

    def tiled_bias(b, s, sh):
        return jnp.tile((b * s + sh).reshape(1, cout), (1, W)).astype(jnp.float32)

    return dict(
        band1=_band_conv3x3(p["w1"], s1, W),
        b1=tiled_bias(p["b1"], s1, sh1),
        band2=_band_conv3x3(p["w2"], s2, W),
        b2=tiled_bias(p["b2"], s2, sh2),
        wsc=jnp.kron(jnp.eye(W, dtype=jnp.float32),
                     p["wsc"] * ssc).astype(jnp.bfloat16),
        bsc=tiled_bias(p["bsc"], ssc, shsc),
        se_w1=p["se_w1"].astype(jnp.float32),
        se_w2=p["se_w2"].astype(jnp.float32),
        pool=jnp.kron(jnp.ones((W, 1), jnp.float32), eye_c) / float(H * W),
        tile=jnp.kron(jnp.ones((1, W), jnp.float32), eye_c),
    )


# ---------------------------------------------------------------------------
# Public wrapper (accepts NCHW like the PyTorch module)
# ---------------------------------------------------------------------------
def basic_block_forward(x_nchw, p, stride=1):
    N, cin, H, W = x_nchw.shape
    cout = p["w1"].shape[-1]
    assert stride == 1, "TODO(synk): stride > 1 not implemented"
    proj = (stride != 1) or (cin != cout)

    f = fold_params(p, H, W, cin, cout)
    hidden = f["se_w1"].shape[1]

    # NCHW -> NHWC -> channel-minor rows (N, H, W*cin); lane-dense layout.
    x = jnp.transpose(x_nchw, (0, 2, 3, 1)).astype(jnp.float32)
    x = x.reshape(N, H, W * cin)

    kernel = functools.partial(_basic_block_kernel,
                               H=H, W=W, cout=cout, proj=proj)

    out = pl.pallas_call(
        kernel,
        out_shape=jax.ShapeDtypeStruct((N, H, W * cout), jnp.float32),
        grid_spec=pltpu.PrefetchScalarGridSpec(
            num_scalar_prefetch=0,
            grid=(N,),
            in_specs=[
                pl.BlockSpec((None, H, W * cin), lambda n: (n, 0, 0)),
                pl.BlockSpec((3, W * cin, W * cout), lambda n: (0, 0, 0)),
                pl.BlockSpec((1, W * cout), lambda n: (0, 0)),
                pl.BlockSpec((3, W * cout, W * cout), lambda n: (0, 0, 0)),
                pl.BlockSpec((1, W * cout), lambda n: (0, 0)),
                pl.BlockSpec((W * cin, W * cout), lambda n: (0, 0)),
                pl.BlockSpec((1, W * cout), lambda n: (0, 0)),
                pl.BlockSpec((cout, hidden), lambda n: (0, 0)),
                pl.BlockSpec((hidden, cout), lambda n: (0, 0)),
                pl.BlockSpec((W * cout, cout), lambda n: (0, 0)),
                pl.BlockSpec((cout, W * cout), lambda n: (0, 0)),
            ],
            out_specs=pl.BlockSpec((None, H, W * cout), lambda n: (n, 0, 0)),
            scratch_shapes=[
                pltpu.VMEM((H + 2, W * cin), jnp.float32),   # vertically padded x
                pltpu.VMEM((H + 2, W * cout), jnp.float32),  # vertically padded out1
            ],
        ),
        compiler_params=pltpu.CompilerParams(
            dimension_semantics=("parallel",),   # batch across TCs (v7x megacore)
            vmem_limit_bytes=32 * 1024 * 1024,
        ),
    )(x, f["band1"], f["b1"], f["band2"], f["b2"], f["wsc"], f["bsc"],
      f["se_w1"], f["se_w2"], f["pool"], f["tile"])

    out = out.reshape(N, H, W, cout)
    return jnp.transpose(out, (0, 3, 1, 2))                 # NHWC -> NCHW


# ---------------------------------------------------------------------------
# Parameters + pure-JAX reference (same inference-mode math: BN folded into the
# weights, conv/FC operands in bf16, f32 accumulation) for tight validation.
# ---------------------------------------------------------------------------
def init_params(key, cin, cout, ratio=16):
    ks = jax.random.split(key, 11)
    hidden = max(cout // ratio, 1)

    def bn(k, c):
        k1, k2, k3, k4 = jax.random.split(k, 4)
        return dict(gamma=1.0 + 0.1 * jax.random.normal(k1, (c,), jnp.float32),
                    beta=0.1 * jax.random.normal(k2, (c,), jnp.float32),
                    mean=0.1 * jax.random.normal(k3, (c,), jnp.float32),
                    var=1.0 + 0.1 * jnp.abs(jax.random.normal(k4, (c,), jnp.float32)))

    return dict(
        w1=0.1 * jax.random.normal(ks[0], (3, 3, cin, cout), jnp.float32),   # HWIO
        b1=0.1 * jax.random.normal(ks[1], (cout,), jnp.float32),
        bn1=bn(ks[2], cout),
        w2=0.1 * jax.random.normal(ks[3], (3, 3, cout, cout), jnp.float32),
        b2=0.1 * jax.random.normal(ks[4], (cout,), jnp.float32),
        bn2=bn(ks[5], cout),
        se_w1=0.2 * jax.random.normal(ks[6], (cout, hidden), jnp.float32),   # (in, out)
        se_w2=0.2 * jax.random.normal(ks[7], (hidden, cout), jnp.float32),
        wsc=0.1 * jax.random.normal(ks[8], (cin, cout), jnp.float32),        # 1x1 proj
        bsc=0.1 * jax.random.normal(ks[9], (cout,), jnp.float32),
        bnsc=bn(ks[10], cout),
    )


def reference_forward(x_nchw, p):
    N, cin, H, W = x_nchw.shape
    cout = p["w1"].shape[-1]
    x = jnp.transpose(x_nchw, (0, 2, 3, 1)).astype(jnp.float32)   # NHWC
    dn = ("NHWC", "HWIO", "NHWC")

    def fold(w, b, bn):
        s, sh = _fold_bn(bn)
        return (w * s).astype(jnp.bfloat16), (b * s + sh).reshape(1, 1, 1, -1)

    def conv(inp, w_bf16, b_folded, relu):
        y = lax.conv_general_dilated(inp.astype(jnp.bfloat16), w_bf16, (1, 1),
                                     "SAME", dimension_numbers=dn,
                                     preferred_element_type=jnp.float32)
        y = y + b_folded
        return jnp.maximum(y, 0.0) if relu else y

    w1, b1 = fold(p["w1"], p["b1"], p["bn1"])
    w2, b2 = fold(p["w2"], p["b2"], p["bn2"])
    wsc, bsc = fold(p["wsc"].reshape(1, 1, cin, cout), p["bsc"], p["bnsc"])

    out = conv(x, w1, b1, relu=True)
    out = conv(out, w2, b2, relu=False)

    pooled = jnp.mean(out, axis=(1, 2))                           # (N, cout)
    h = jnp.maximum(pooled @ p["se_w1"], 0.0)
    gate = jax.nn.sigmoid(h @ p["se_w2"])
    short = conv(x, wsc, bsc, relu=False)
    out = jnp.maximum(out * gate[:, None, None, :] + short, 0.0)
    return jnp.transpose(out, (0, 3, 1, 2))


# ---------------------------------------------------------------------------
if __name__ == "__main__":
    N, CIN, COUT, H, W = 2, 16, 32, 8, 8

    key = jax.random.PRNGKey(0)
    kx, kp = jax.random.split(key)
    x = jax.random.normal(kx, (N, CIN, H, W), jnp.float32)        # NCHW like PyTorch
    params = init_params(kp, CIN, COUT)

    out = jax.block_until_ready(basic_block_forward(x, params, stride=1))
    assert out.shape == (N, COUT, H, W)

    ref = jax.block_until_ready(reference_forward(x, params))
    np.testing.assert_allclose(np.asarray(out), np.asarray(ref),
                               rtol=1e-2, atol=1e-2)

    print("KERNEL_OK")
</pallas_src>

<mosaic_0001>
module attributes {stable_mosaic.version = 11 : i64} {
  func.func @_basic_block_kernel(%arg0: i32, %arg1: memref<1x8x128xf32, #tpu.memory_space<vmem>>, %arg2: memref<3x128x256xbf16, #tpu.memory_space<vmem>>, %arg3: memref<1x256xf32, #tpu.memory_space<vmem>>, %arg4: memref<3x256x256xbf16, #tpu.memory_space<vmem>>, %arg5: memref<1x256xf32, #tpu.memory_space<vmem>>, %arg6: memref<128x256xbf16, #tpu.memory_space<vmem>>, %arg7: memref<1x256xf32, #tpu.memory_space<vmem>>, %arg8: memref<32x2xf32, #tpu.memory_space<vmem>>, %arg9: memref<2x32xf32, #tpu.memory_space<vmem>>, %arg10: memref<256x32xf32, #tpu.memory_space<vmem>>, %arg11: memref<32x256xf32, #tpu.memory_space<vmem>>, %arg12: memref<1x8x256xf32, #tpu.memory_space<vmem>>, %arg13: memref<10x128xf32, #tpu.memory_space<vmem>>, %arg14: memref<10x256xf32, #tpu.memory_space<vmem>>) attributes {dimension_semantics = [#tpu.dimension_semantics<parallel>], iteration_bounds = array<i64: 2>, scalar_prefetch = 0 : i64, scratch_operands = 2 : i64, tpu.core_type = #tpu.core_type<tc>, window_params = [{transform_indices = @transform_0, window_bounds = array<i64: 1, 8, 128>}, {pipeline_mode = #tpu.pipeline_mode<synchronous>, transform_indices = @transform_1, window_bounds = array<i64: 3, 128, 256>}, {pipeline_mode = #tpu.pipeline_mode<synchronous>, transform_indices = @transform_2, window_bounds = array<i64: 1, 256>}, {pipeline_mode = #tpu.pipeline_mode<synchronous>, transform_indices = @transform_3, window_bounds = array<i64: 3, 256, 256>}, {pipeline_mode = #tpu.pipeline_mode<synchronous>, transform_indices = @transform_4, window_bounds = array<i64: 1, 256>}, {pipeline_mode = #tpu.pipeline_mode<synchronous>, transform_indices = @transform_5, window_bounds = array<i64: 128, 256>}, {pipeline_mode = #tpu.pipeline_mode<synchronous>, transform_indices = @transform_6, window_bounds = array<i64: 1, 256>}, {pipeline_mode = #tpu.pipeline_mode<synchronous>, transform_indices = @transform_7, window_bounds = array<i64: 32, 2>}, {pipeline_mode = #tpu.pipeline_mode<synchronous>, transform_indices = @transform_8, window_bounds = array<i64: 2, 32>}, {pipeline_mode = #tpu.pipeline_mode<synchronous>, transform_indices = @transform_9, window_bounds = array<i64: 256, 32>}, {pipeline_mode = #tpu.pipeline_mode<synchronous>, transform_indices = @transform_10, window_bounds = array<i64: 32, 256>}, {transform_indices = @transform_11, window_bounds = array<i64: 1, 8, 256>}]} {
    %cst = arith.constant 0.000000e+00 : f32
    %0 = vector.broadcast %cst : f32 to vector<10x128xf32>
    %c0 = arith.constant 0 : index
    %c0_0 = arith.constant 0 : index
    %1 = vector.load %arg13[%c0, %c0_0] : memref<10x128xf32, #tpu.memory_space<vmem>>, vector<10x128xf32>
    tpu.vector_store %arg13[%c0, %c0_0], %0 {strides = array<i32>} : memref<10x128xf32, #tpu.memory_space<vmem>>, vector<10x128xf32>,
    %c0_1 = arith.constant 0 : index
    %c0_2 = arith.constant 0 : index
    %c0_3 = arith.constant 0 : index
    %2 = vector.load %arg1[%c0_1, %c0_2, %c0_3] : memref<1x8x128xf32, #tpu.memory_space<vmem>>, vector<1x8x128xf32>
    %3 = vector.shape_cast %2 : vector<1x8x128xf32> to vector<8x128xf32>
    %c1 = arith.constant 1 : index
    %c0_4 = arith.constant 0 : index
    %4 = vector.load %arg13[%c1, %c0_4] : memref<10x128xf32, #tpu.memory_space<vmem>>, vector<8x128xf32>
    tpu.vector_store %arg13[%c1, %c0_4], %3 {strides = array<i32>} : memref<10x128xf32, #tpu.memory_space<vmem>>, vector<8x128xf32>,
    %cst_5 = arith.constant 0.000000e+00 : f32
    %5 = vector.broadcast %cst_5 : f32 to vector<8x256xf32>
    %c0_6 = arith.constant 0 : index
    %c0_7 = arith.constant 0 : index
    %6 = vector.load %arg13[%c0_6, %c0_7] : memref<10x128xf32, #tpu.memory_space<vmem>>, vector<8x128xf32>
    %7 = arith.truncf %6 : vector<8x128xf32> to vector<8x128xbf16>
    %c0_8 = arith.constant 0 : index
    %c0_9 = arith.constant 0 : index
    %c0_10 = arith.constant 0 : index
    %8 = vector.load %arg2[%c0_8, %c0_9, %c0_10] : memref<3x128x256xbf16, #tpu.memory_space<vmem>>, vector<1x128x256xbf16>
    %9 = vector.shape_cast %8 : vector<1x128x256xbf16> to vector<128x256xbf16>
    %cst_11 = arith.constant dense<0.000000e+00> : vector<8x256xf32>
    %10 = tpu.matmul %7, %9, %cst_11 {dimension_numbers = #tpu.dot_dimension_numbers<[1], [0], [0], [1], [0, 0, 1, 1], [], []>} : vector<8x128xbf16>, vector<128x256xbf16>, vector<8x256xf32> -> vector<8x256xf32>
    %11 = arith.addf %5, %10 : vector<8x256xf32>
    %c1_12 = arith.constant 1 : index
    %c0_13 = arith.constant 0 : index
    %12 = vector.load %arg13[%c1_12, %c0_13] : memref<10x128xf32, #tpu.memory_space<vmem>>, vector<8x128xf32>
    %13 = arith.truncf %12 : vector<8x128xf32> to vector<8x128xbf16>
    %c1_14 = arith.constant 1 : index
    %c0_15 = arith.constant 0 : index
    %c0_16 = arith.constant 0 : index
    %14 = vector.load %arg2[%c1_14, %c0_15, %c0_16] : memref<3x128x256xbf16, #tpu.memory_space<vmem>>, vector<1x128x256xbf16>
    %15 = vector.shape_cast %14 : vector<1x128x256xbf16> to vector<128x256xbf16>
    %cst_17 = arith.constant dense<0.000000e+00> : vector<8x256xf32>
    %16 = tpu.matmul %13, %15, %cst_17 {dimension_numbers = #tpu.dot_dimension_numbers<[1], [0], [0], [1], [0, 0, 1, 1], [], []>} : vector<8x128xbf16>, vector<128x256xbf16>, vector<8x256xf32> -> vector<8x256xf32>
    %17 = arith.addf %11, %16 : vector<8x256xf32>
    %c2 = arith.constant 2 : index
    %c0_18 = arith.constant 0 : index
    %18 = vector.load %arg13[%c2, %c0_18] : memref<10x128xf32, #tpu.memory_space<vmem>>, vector<8x128xf32>
    %19 = arith.truncf %18 : vector<8x128xf32> to vector<8x128xbf16>
    %c2_19 = arith.constant 2 : index
    %c0_20 = arith.constant 0 : index
    %c0_21 = arith.constant 0 : index
    %20 = vector.load %arg2[%c2_19, %c0_20, %c0_21] : memref<3x128x256xbf16, #tpu.memory_space<vmem>>, vector<1x128x256xbf16>
    %21 = vector.shape_cast %20 : vector<1x128x256xbf16> to vector<128x256xbf16>
    %cst_22 = arith.constant dense<0.000000e+00> : vector<8x256xf32>
    %22 = tpu.matmul %19, %21, %cst_22 {dimension_numbers = #tpu.dot_dimension_numbers<[1], [0], [0], [1], [0, 0, 1, 1], [], []>} : vector<8x128xbf16>, vector<128x256xbf16>, vector<8x256xf32> -> vector<8x256xf32>
    %23 = arith.addf %17, %22 : vector<8x256xf32>
    %c0_23 = arith.constant 0 : index
    %c0_24 = arith.constant 0 : index
    %24 = vector.load %arg3[%c0_23, %c0_24] : memref<1x256xf32, #tpu.memory_space<vmem>>, vector<1x256xf32>
    %25 = vector.broadcast %24 : vector<1x256xf32> to vector<8x256xf32>
    %26 = arith.addf %23, %25 : vector<8x256xf32>
    %cst_25 = arith.constant 0.000000e+00 : f32
    %27 = vector.broadcast %cst_25 : f32 to vector<8x256xf32>
    %28 = arith.maximumf %26, %27 : vector<8x256xf32>
    %cst_26 = arith.constant 0.000000e+00 : f32
    %29 = vector.broadcast %cst_26 : f32 to vector<10x256xf32>
    %c0_27 = arith.constant 0 : index
    %c0_28 = arith.constant 0 : index
    %30 = vector.load %arg14[%c0_27, %c0_28] : memref<10x256xf32, #tpu.memory_space<vmem>>, vector<10x256xf32>
    tpu.vector_store %arg14[%c0_27, %c0_28], %29 {strides = array<i32>} : memref<10x256xf32, #tpu.memory_space<vmem>>, vector<10x256xf32>,
    %c1_29 = arith.constant 1 : index
    %c0_30 = arith.constant 0 : index
    %31 = vector.load %arg14[%c1_29, %c0_30] : memref<10x256xf32, #tpu.memory_space<vmem>>, vector<8x256xf32>
    tpu.vector_store %arg14[%c1_29, %c0_30], %28 {strides = array<i32>} : memref<10x256xf32, #tpu.memory_space<vmem>>, vector<8x256xf32>,
    %cst_31 = arith.constant 0.000000e+00 : f32
    %32 = vector.broadcast %cst_31 : f32 to vector<8x256xf32>
    %c0_32 = arith.constant 0 : index
    %c0_33 = arith.constant 0 : index
    %33 = vector.load %arg14[%c0_32, %c0_33] : memref<10x256xf32, #tpu.memory_space<vmem>>, vector<8x256xf32>
    %34 = arith.truncf %33 : vector<8x256xf32> to vector<8x256xbf16>
    %c0_34 = arith.constant 0 : index
    %c0_35 = arith.constant 0 : index
    %c0_36 = arith.constant 0 : index
    %35 = vector.load %arg4[%c0_34, %c0_35, %c0_36] : memref<3x256x256xbf16, #tpu.memory_space<vmem>>, vector<1x256x256xbf16>
    %36 = vector.shape_cast %35 : vector<1x256x256xbf16> to vector<256x256xbf16>
    %cst_37 = arith.constant dense<0.000000e+00> : vector<8x256xf32>
    %37 = tpu.matmul %34, %36, %cst_37 {dimension_numbers = #tpu.dot_dimension_numbers<[1], [0], [0], [1], [0, 0, 1, 1], [], []>} : vector<8x256xbf16>, vector<256x256xbf16>, vector<8x256xf32> -> vector<8x256xf32>
    %38 = arith.addf %32, %37 : vector<8x256xf32>
    %c1_38 = arith.constant 1 : index
    %c0_39 = arith.constant 0 : index
    %39 = vector.load %arg14[%c1_38, %c0_39] : memref<10x256xf32, #tpu.memory_space<vmem>>, vector<8x256xf32>
    %40 = arith.truncf %39 : vector<8x256xf32> to vector<8x256xbf16>
    %c1_40 = arith.constant 1 : index
    %c0_41 = arith.constant 0 : index
    %c0_42 = arith.constant 0 : index
    %41 = vector.load %arg4[%c1_40, %c0_41, %c0_42] : memref<3x256x256xbf16, #tpu.memory_space<vmem>>, vector<1x256x256xbf16>
    %42 = vector.shape_cast %41 : vector<1x256x256xbf16> to vector<256x256xbf16>
    %cst_43 = arith.constant dense<0.000000e+00> : vector<8x256xf32>
    %43 = tpu.matmul %40, %42, %cst_43 {dimension_numbers = #tpu.dot_dimension_numbers<[1], [0], [0], [1], [0, 0, 1, 1], [], []>} : vector<8x256xbf16>, vector<256x256xbf16>, vector<8x256xf32> -> vector<8x256xf32>
    %44 = arith.addf %38, %43 : vector<8x256xf32>
    %c2_44 = arith.constant 2 : index
    %c0_45 = arith.constant 0 : index
    %45 = vector.load %arg14[%c2_44, %c0_45] : memref<10x256xf32, #tpu.memory_space<vmem>>, vector<8x256xf32>
    %46 = arith.truncf %45 : vector<8x256xf32> to vector<8x256xbf16>
    %c2_46 = arith.constant 2 : index
    %c0_47 = arith.constant 0 : index
    %c0_48 = arith.constant 0 : index
    %47 = vector.load %arg4[%c2_46, %c0_47, %c0_48] : memref<3x256x256xbf16, #tpu.memory_space<vmem>>, vector<1x256x256xbf16>
    %48 = vector.shape_cast %47 : vector<1x256x256xbf16> to vector<256x256xbf16>
    %cst_49 = arith.constant dense<0.000000e+00> : vector<8x256xf32>
    %49 = tpu.matmul %46, %48, %cst_49 {dimension_numbers = #tpu.dot_dimension_numbers<[1], [0], [0], [1], [0, 0, 1, 1], [], []>} : vector<8x256xbf16>, vector<256x256xbf16>, vector<8x256xf32> -> vector<8x256xf32>
    %50 = arith.addf %44, %49 : vector<8x256xf32>
    %c0_50 = arith.constant 0 : index
    %c0_51 = arith.constant 0 : index
    %51 = vector.load %arg5[%c0_50, %c0_51] : memref<1x256xf32, #tpu.memory_space<vmem>>, vector<1x256xf32>
    %52 = vector.broadcast %51 : vector<1x256xf32> to vector<8x256xf32>
    %53 = arith.addf %50, %52 : vector<8x256xf32>
    %c0_52 = arith.constant 0 : index
    %c0_53 = arith.constant 0 : index
    %c0_54 = arith.constant 0 : index
    %54 = vector.load %arg1[%c0_52, %c0_53, %c0_54] : memref<1x8x128xf32, #tpu.memory_space<vmem>>, vector<1x8x128xf32>
    %55 = vector.shape_cast %54 : vector<1x8x128xf32> to vector<8x128xf32>
    %56 = arith.truncf %55 : vector<8x128xf32> to vector<8x128xbf16>
    %c0_55 = arith.constant 0 : index
    %c0_56 = arith.constant 0 : index
    %57 = vector.load %arg6[%c0_55, %c0_56] : memref<128x256xbf16, #tpu.memory_space<vmem>>, vector<128x256xbf16>
    %cst_57 = arith.constant dense<0.000000e+00> : vector<8x256xf32>
    %58 = tpu.matmul %56, %57, %cst_57 {dimension_numbers = #tpu.dot_dimension_numbers<[1], [0], [0], [1], [0, 0, 1, 1], [], []>} : vector<8x128xbf16>, vector<128x256xbf16>, vector<8x256xf32> -> vector<8x256xf32>
    %c0_58 = arith.constant 0 : index
    %c0_59 = arith.constant 0 : index
    %59 = vector.load %arg7[%c0_58, %c0_59] : memref<1x256xf32, #tpu.memory_space<vmem>>, vector<1x256xf32>
    %60 = vector.broadcast %59 : vector<1x256xf32> to vector<8x256xf32>
    %61 = arith.addf %58, %60 : vector<8x256xf32>
    %cst_60 = arith.constant dense<0.000000e+00> : vector<256xf32>
    %62 = vector.multi_reduction <add>, %53, %cst_60 [0] : vector<8x256xf32> to vector<256xf32>
    %63 = vector.shape_cast %62 : vector<256xf32> to vector<1x256xf32>
    %c0_61 = arith.constant 0 : index
    %c0_62 = arith.constant 0 : index
    %64 = vector.load %arg10[%c0_61, %c0_62] : memref<256x32xf32, #tpu.memory_space<vmem>>, vector<256x32xf32>
    %cst_63 = arith.constant dense<0.000000e+00> : vector<1x32xf32>
    %65 = tpu.matmul %63, %64, %cst_63 {dimension_numbers = #tpu.dot_dimension_numbers<[1], [0], [0], [1], [0, 0, 1, 1], [], []>} : vector<1x256xf32>, vector<256x32xf32>, vector<1x32xf32> -> vector<1x32xf32>
    %c0_64 = arith.constant 0 : index
    %c0_65 = arith.constant 0 : index
    %66 = vector.load %arg8[%c0_64, %c0_65] : memref<32x2xf32, #tpu.memory_space<vmem>>, vector<32x2xf32>
    %cst_66 = arith.constant dense<0.000000e+00> : vector<1x2xf32>
    %67 = tpu.matmul %65, %66, %cst_66 {dimension_numbers = #tpu.dot_dimension_numbers<[1], [0], [0], [1], [0, 0, 1, 1], [], []>} : vector<1x32xf32>, vector<32x2xf32>, vector<1x2xf32> -> vector<1x2xf32>
    %cst_67 = arith.constant 0.000000e+00 : f32
    %68 = vector.broadcast %cst_67 : f32 to vector<1x2xf32>
    %69 = arith.maximumf %67, %68 : vector<1x2xf32>
    %c0_68 = arith.constant 0 : index
    %c0_69 = arith.constant 0 : index
    %70 = vector.load %arg9[%c0_68, %c0_69] : memref<2x32xf32, #tpu.memory_space<vmem>>, vector<2x32xf32>
    %cst_70 = arith.constant dense<0.000000e+00> : vector<1x32xf32>
    %71 = tpu.matmul %69, %70, %cst_70 {dimension_numbers = #tpu.dot_dimension_numbers<[1], [0], [0], [1], [0, 0, 1, 1], [], []>} : vector<1x2xf32>, vector<2x32xf32>, vector<1x32xf32> -> vector<1x32xf32>
    %cst_71 = arith.constant 0.000000e+00 : f32
    %72 = vector.broadcast %cst_71 : f32 to vector<1x32xf32>
    %73 = arith.subf %72, %71 : vector<1x32xf32>
    %74 = math.exp %73 : vector<1x32xf32>
    %cst_72 = arith.constant 1.000000e+00 : f32
    %75 = vector.broadcast %cst_72 : f32 to vector<1x32xf32>
    %76 = arith.addf %75, %74 : vector<1x32xf32>
    %77 = tpu.reciprocal %76 {approx = true} : vector<1x32xf32> -> vector<1x32xf32>
    %c0_73 = arith.constant 0 : index
    %c0_74 = arith.constant 0 : index
    %78 = vector.load %arg11[%c0_73, %c0_74] : memref<32x256xf32, #tpu.memory_space<vmem>>, vector<32x256xf32>
    %cst_75 = arith.constant dense<0.000000e+00> : vector<1x256xf32>
    %79 = tpu.matmul %77, %78, %cst_75 {dimension_numbers = #tpu.dot_dimension_numbers<[1], [0], [0], [1], [0, 0, 1, 1], [], []>} : vector<1x32xf32>, vector<32x256xf32>, vector<1x256xf32> -> vector<1x256xf32>
    %80 = vector.broadcast %79 : vector<1x256xf32> to vector<8x256xf32>
    %81 = arith.mulf %53, %80 : vector<8x256xf32>
    %82 = arith.addf %81, %61 : vector<8x256xf32>
    %cst_76 = arith.constant 0.000000e+00 : f32
    %83 = vector.broadcast %cst_76 : f32 to vector<8x256xf32>
    %84 = arith.maximumf %82, %83 : vector<8x256xf32>
    %c0_77 = arith.constant 0 : index
    %c0_78 = arith.constant 0 : index
    %c0_79 = arith.constant 0 : index
    %85 = vector.load %arg12[%c0_77, %c0_78, %c0_79] : memref<1x8x256xf32, #tpu.memory_space<vmem>>, vector<1x8x256xf32>
    %86 = vector.shape_cast %85 : vector<1x8x256xf32> to vector<8x256xf32>
    %87 = vector.shape_cast %84 : vector<8x256xf32> to vector<1x8x256xf32>
    tpu.vector_store %arg12[%c0_77, %c0_78, %c0_79], %87 {strides = array<i32>} : memref<1x8x256xf32, #tpu.memory_space<vmem>>, vector<1x8x256xf32>,
    return
  }
  func.func @transform_0(%arg0: i32) -> (i32, i32, i32) {
    %c0_i32 = arith.constant 0 : i32
    %c0_i32_0 = arith.constant 0 : i32
    %c0_i32_1 = arith.constant 0 : i32
    return %arg0, %c0_i32, %c0_i32_0 : i32, i32, i32
  }
  func.func @transform_1(%arg0: i32) -> (i32, i32, i32) {
    %c0_i32 = arith.constant 0 : i32
    %c0_i32_0 = arith.constant 0 : i32
    %c0_i32_1 = arith.constant 0 : i32
    %c0_i32_2 = arith.constant 0 : i32
    return %c0_i32, %c0_i32_0, %c0_i32_1 : i32, i32, i32
  }
  func.func @transform_2(%arg0: i32) -> (i32, i32) {
    %c0_i32 = arith.constant 0 : i32
    %c0_i32_0 = arith.constant 0 : i32
    %c0_i32_1 = arith.constant 0 : i32
    return %c0_i32, %c0_i32_0 : i32, i32
  }
  func.func @transform_3(%arg0: i32) -> (i32, i32, i32) {
    %c0_i32 = arith.constant 0 : i32
    %c0_i32_0 = arith.constant 0 : i32
    %c0_i32_1 = arith.constant 0 : i32
    %c0_i32_2 = arith.constant 0 : i32
    return %c0_i32, %c0_i32_0, %c0_i32_1 : i32, i32, i32
  }
  func.func @transform_4(%arg0: i32) -> (i32, i32) {
    %c0_i32 = arith.constant 0 : i32
    %c0_i32_0 = arith.constant 0 : i32
    %c0_i32_1 = arith.constant 0 : i32
    return %c0_i32, %c0_i32_0 : i32, i32
  }
  func.func @transform_5(%arg0: i32) -> (i32, i32) {
    %c0_i32 = arith.constant 0 : i32
    %c0_i32_0 = arith.constant 0 : i32
    %c0_i32_1 = arith.constant 0 : i32
    return %c0_i32, %c0_i32_0 : i32, i32
  }
  func.func @transform_6(%arg0: i32) -> (i32, i32) {
    %c0_i32 = arith.constant 0 : i32
    %c0_i32_0 = arith.constant 0 : i32
    %c0_i32_1 = arith.constant 0 : i32
    return %c0_i32, %c0_i32_0 : i32, i32
  }
  func.func @transform_7(%arg0: i32) -> (i32, i32) {
    %c0_i32 = arith.constant 0 : i32
    %c0_i32_0 = arith.constant 0 : i32
    %c0_i32_1 = arith.constant 0 : i32
    return %c0_i32, %c0_i32_0 : i32, i32
  }
  func.func @transform_8(%arg0: i32) -> (i32, i32) {
    %c0_i32 = arith.constant 0 : i32
    %c0_i32_0 = arith.constant 0 : i32
    %c0_i32_1 = arith.constant 0 : i32
    return %c0_i32, %c0_i32_0 : i32, i32
  }
  func.func @transform_9(%arg0: i32) -> (i32, i32) {
    %c0_i32 = arith.constant 0 : i32
    %c0_i32_0 = arith.constant 0 : i32
    %c0_i32_1 = arith.constant 0 : i32
    return %c0_i32, %c0_i32_0 : i32, i32
  }
  func.func @transform_10(%arg0: i32) -> (i32, i32) {
    %c0_i32 = arith.constant 0 : i32
    %c0_i32_0 = arith.constant 0 : i32
    %c0_i32_1 = arith.constant 0 : i32
    return %c0_i32, %c0_i32_0 : i32, i32
  }
  func.func @transform_11(%arg0: i32) -> (i32, i32, i32) {
    %c0_i32 = arith.constant 0 : i32
    %c0_i32_0 = arith.constant 0 : i32
    %c0_i32_1 = arith.constant 0 : i32
    return %arg0, %c0_i32, %c0_i32_0 : i32, i32, i32
  }
}

</mosaic_0001>

<llo_original>
// kernel: tpu_custom_call.1
$region0: #{tpu_custom_call.1}
  #allocation0 [shape = 'u32[]', space=smem, size = 0x4, offset = 0x4, fixed_abs, tag = 'smem constant byte address 0x4 - core index']
  #allocation1 [shape = 'u32[72,128]{1,0:T(1,128)}', space=vmem, size = 0x9000, scoped, tag = 'internal scratch']
  #allocation2 [shape = 'f32[10,128]{1,0:T(8,128)}', space=vmem, size = 0x2000, scoped, tag = 'scratch operand']
  #allocation3 [shape = 'f32[10,256]{1,0:T(8,128)}', space=vmem, size = 0x4000, scoped, tag = 'scratch operand']
  %s0 = inlined_call_operand.vmem [shape: f32[2,8,128], index: 0, kind: input, shape index: {}]
  %s1 = inlined_call_operand.hbm [shape: bf16[3,128,256], index: 1, kind: input, shape index: {}]
  %s2 = inlined_call_operand.vmem [shape: f32[1,256], index: 2, kind: input, shape index: {}]
  %s3 = inlined_call_operand.hbm [shape: bf16[3,256,256], index: 3, kind: input, shape index: {}]
  %s4 = inlined_call_operand.vmem [shape: f32[1,256], index: 4, kind: input, shape index: {}]
  %s5 = inlined_call_operand.vmem [shape: bf16[128,256], index: 5, kind: input, shape index: {}]
  %s6 = inlined_call_operand.vmem [shape: f32[1,256], index: 6, kind: input, shape index: {}]
  %s7 = inlined_call_operand.vmem [shape: f32[32,2], index: 7, kind: input, shape index: {}]
  %s8 = inlined_call_operand.vmem [shape: f32[2,32], index: 8, kind: input, shape index: {}]
  %s9 = inlined_call_operand.vmem [shape: f32[256,32], index: 9, kind: input, shape index: {}]
  %s10 = inlined_call_operand.vmem [shape: f32[32,256], index: 10, kind: input, shape index: {}]
  %s11 = inlined_call_operand.hbm [shape: f32[2,8,256], index: 11, kind: output, shape index: {}]
  %s12 = sld [smem:[#allocation0]]
  $region85: #{tpu_custom_call.1} parent=0
    _
  %s14 = ssub.s32 1, %s12
  %s15 = scalar_select 0, %s14, %s12
  $region1: #{tpu_custom_call.1} parent=0
    #allocation4 [shape = 'u8[196608]{0}', space=vmem, size = 0x30000, scoped, tag = 'input window, operand 1, single buffered']
    #allocation5 [shape = 's32[2]{0}', space=sflag, size = 0x8, scoped, tag = 'scoped memory for tpu_custom_call.1']
    #allocation6 [shape = 's32[2]{0}', space=sflag, size = 0x8, scoped, tag = 'scoped memory for tpu_custom_call.1']
    #allocation7 [shape = 'u8[393216]{0}', space=vmem, size = 0x60000, scoped, tag = 'input window, operand 3, single buffered']
    #allocation8 [shape = 's32[1]{0}', space=sflag, size = 0x4, scoped, tag = 'scoped memory for tpu_custom_call.1']
    #allocation9 [shape = 'u8[16384]{0}', space=vmem, size = 0x4000, scoped, tag = 'output window, operand 0']
    %16 = vsyncpa [#allocation5], 0
    %17 = vsyncpa [#allocation8], 0
    %18 = vsyncpa [#allocation6], 0
    %s19 = scalar_lea.sflag [#allocation6], 1
    %20 = vsyncpa %s19, 0
    loop: start=0, step=1, limit=4
    $region2: #{tpu_custom_call.1} parent=1 // loop_pre_header
      _
    $region3: #{tpu_custom_call.1} parent=1 // loop_header
      %s22 = sphi 0, %s26
      %p23 = scmp.ge.s32.totalorder %s22, 4
      %s32 = sphi 0, %s34
      %s35 = sphi 0, %s32
      %s36 = sphi 0, %s35
      %s52 = sphi 0, %s36
      %s56 = sphi 0, %s56
      %s58 = sphi 0, %s56
      %s59 = sphi 0, %s58
      %s73 = sphi 0, %s59
      %s77 = sphi 0, %s77
      %s79 = sphi 0, %s77
      %s80 = sphi 0, %s79
      %s94 = sphi 0, %s80
      %s98 = sphi 0, %s98
      %s100 = sphi 0, %s98
      %s101 = sphi 0, %s100
      %s115 = sphi 0, %s101
      %s119 = sphi 0, %s119
      %s121 = sphi 0, %s119
      %s122 = sphi 0, %s121
      %s136 = sphi 0, %s122
      %s140 = sphi 0, %s140
      %s142 = sphi 0, %s140
      %s143 = sphi 0, %s142
      %s157 = sphi 0, %s143
      %s161 = sphi 0, %s161
      %s163 = sphi 0, %s161
      %s164 = sphi 0, %s163
      %s178 = sphi 0, %s164
      %s182 = sphi 0, %s182
      %s184 = sphi 0, %s182
      %s185 = sphi 0, %s184
      %s199 = sphi 0, %s185
      %s203 = sphi 0, %s203
      %s205 = sphi 0, %s203
      %s206 = sphi 0, %s205
      %s220 = sphi 0, %s206
      %s224 = sphi 0, %s224
      %s226 = sphi 0, %s224
      %s227 = sphi 0, %s226
      %s241 = sphi 0, %s227
      %s245 = sphi 0, %s245
      %s247 = sphi 0, %s245
      %s248 = sphi 0, %s247
      %s262 = sphi 0, %s248
      %s268 = sphi 0, %s270
      %s271 = sphi 0, %s268
      %s272 = sphi 0, %s271
      %s288 = sphi 0, %s272
    $region4: #{tpu_custom_call.1} parent=1 // loop_header_branch
      %25 = sbr.rel (%p23) target = $region8
    $region5: #{tpu_custom_call.1} parent=1 // loop_body
      %s27 = ssub.s32 %s22, 1
      %s28 = ssub.s32 %s22, 2
      %s29 = sadd.s32 %s22, 1
      %s30 = ssub.s32 %s22, %s29
      %p31 = scmp.eq.s32.totalorder %s30, 0
      %s33 = sadd.s32 %s32, 1
      %s34 = scalar_select %p31, %s32, %s33
      %p37 = pneg %p31
      %p38 = scmp.eq.s32.totalorder %s22, 1
      %p39 = por %p37, %p38
      %p40 = scmp.ne.s32.totalorder %s32, %s35
      %p41 = scmp.eq.s32.totalorder %s22, 0
      %p42 = por %p40, %p41
      %p43 = scmp.ne.s32.totalorder %s32, %s35
      %p44 = scmp.eq.s32.totalorder %s27, 1
      %p45 = por %p43, %p44
      %p46 = scmp.ne.s32.totalorder %s35, %s36
      %p47 = scmp.eq.s32.totalorder %s27, 0
      %p48 = por %p46, %p47
      %p49 = scmp.ne.s32.totalorder %s35, %s36
      %p50 = scmp.eq.s32.totalorder %s28, 1
      %p51 = por %p49, %p50
      %p53 = scmp.ne.s32.totalorder %s36, %s52
      %p54 = scmp.eq.s32.totalorder %s28, 0
      %p55 = por %p53, %p54
      %s57 = sadd.s32 %s56, 1
      %p60 = scmp.eq.s32.totalorder %s22, 1
      %p61 = scmp.ne.s32.totalorder %s56, %s58
      %p62 = scmp.eq.s32.totalorder %s22, 0
      %p63 = por %p61, %p62
      %p64 = scmp.ne.s32.totalorder %s56, %s58
      %p65 = scmp.eq.s32.totalorder %s27, 1
      %p66 = por %p64, %p65
      %p67 = scmp.ne.s32.totalorder %s58, %s59
      %p68 = scmp.eq.s32.totalorder %s27, 0
      %p69 = por %p67, %p68
      %p70 = scmp.ne.s32.totalorder %s58, %s59
      %p71 = scmp.eq.s32.totalorder %s28, 1
      %p72 = por %p70, %p71
      %p74 = scmp.ne.s32.totalorder %s59, %s73
      %p75 = scmp.eq.s32.totalorder %s28, 0
      %p76 = por %p74, %p75
      %s78 = sadd.s32 %s77, 1
      %p81 = scmp.eq.s32.totalorder %s22, 1
      %p82 = scmp.ne.s32.totalorder %s77, %s79
      %p83 = scmp.eq.s32.totalorder %s22, 0
      %p84 = por %p82, %p83
      %p85 = scmp.ne.s32.totalorder %s77, %s79
      %p86 = scmp.eq.s32.totalorder %s27, 1
      %p87 = por %p85, %p86
      %p88 = scmp.ne.s32.totalorder %s79, %s80
      %p89 = scmp.eq.s32.totalorder %s27, 0
      %p90 = por %p88, %p89
      %p91 = scmp.ne.s32.totalorder %s79, %s80
      %p92 = scmp.eq.s32.totalorder %s28, 1
      %p93 = por %p91, %p92
      %p95 = scmp.ne.s32.totalorder %s80, %s94
      %p96 = scmp.eq.s32.totalorder %s28, 0
      %p97 = por %p95, %p96
      %s99 = sadd.s32 %s98, 1
      %p102 = scmp.eq.s32.totalorder %s22, 1
      %p103 = scmp.ne.s32.totalorder %s98, %s100
      %p104 = scmp.eq.s32.totalorder %s22, 0
      %p105 = por %p103, %p104
      %p106 = scmp.ne.s32.totalorder %s98, %s100
      %p107 = scmp.eq.s32.totalorder %s27, 1
      %p108 = por %p106, %p107
      %p109 = scmp.ne.s32.totalorder %s100, %s101
      %p110 = scmp.eq.s32.totalorder %s27, 0
      %p111 = por %p109, %p110
      %p112 = scmp.ne.s32.totalorder %s100, %s101
      %p113 = scmp.eq.s32.totalorder %s28, 1
      %p114 = por %p112, %p113
      %p116 = scmp.ne.s32.totalorder %s101, %s115
      %p117 = scmp.eq.s32.totalorder %s28, 0
      %p118 = por %p116, %p117
      %s120 = sadd.s32 %s119, 1
      %p123 = scmp.eq.s32.totalorder %s22, 1
      %p124 = scmp.ne.s32.totalorder %s119, %s121
      %p125 = scmp.eq.s32.totalorder %s22, 0
      %p126 = por %p124, %p125
      %p127 = scmp.ne.s32.totalorder %s119, %s121
      %p128 = scmp.eq.s32.totalorder %s27, 1
      %p129 = por %p127, %p128
      %p130 = scmp.ne.s32.totalorder %s121, %s122
      %p131 = scmp.eq.s32.totalorder %s27, 0
      %p132 = por %p130, %p131
      %p133 = scmp.ne.s32.totalorder %s121, %s122
      %p134 = scmp.eq.s32.totalorder %s28, 1
      %p135 = por %p133, %p134
      %p137 = scmp.ne.s32.totalorder %s122, %s136
      %p138 = scmp.eq.s32.totalorder %s28, 0
      %p139 = por %p137, %p138
      %s141 = sadd.s32 %s140, 1
      %p144 = scmp.eq.s32.totalorder %s22, 1
      %p145 = scmp.ne.s32.totalorder %s140, %s142
      %p146 = scmp.eq.s32.totalorder %s22, 0
      %p147 = por %p145, %p146
      %p148 = scmp.ne.s32.totalorder %s140, %s142
      %p149 = scmp.eq.s32.totalorder %s27, 1
      %p150 = por %p148, %p149
      %p151 = scmp.ne.s32.totalorder %s142, %s143
      %p152 = scmp.eq.s32.totalorder %s27, 0
      %p153 = por %p151, %p152
      %p154 = scmp.ne.s32.totalorder %s142, %s143
      %p155 = scmp.eq.s32.totalorder %s28, 1
      %p156 = por %p154, %p155
      %p158 = scmp.ne.s32.totalorder %s143, %s157
      %p159 = scmp.eq.s32.totalorder %s28, 0
      %p160 = por %p158, %p159
      %s162 = sadd.s32 %s161, 1
      %p165 = scmp.eq.s32.totalorder %s22, 1
      %p166 = scmp.ne.s32.totalorder %s161, %s163
      %p167 = scmp.eq.s32.totalorder %s22, 0
      %p168 = por %p166, %p167
      %p169 = scmp.ne.s32.totalorder %s161, %s163
      %p170 = scmp.eq.s32.totalorder %s27, 1
      %p171 = por %p169, %p170
      %p172 = scmp.ne.s32.totalorder %s163, %s164
      %p173 = scmp.eq.s32.totalorder %s27, 0
      %p174 = por %p172, %p173
      %p175 = scmp.ne.s32.totalorder %s163, %s164
      %p176 = scmp.eq.s32.totalorder %s28, 1
      %p177 = por %p175, %p176
      %p179 = scmp.ne.s32.totalorder %s164, %s178
      %p180 = scmp.eq.s32.totalorder %s28, 0
      %p181 = por %p179, %p180
      %s183 = sadd.s32 %s182, 1
      %p186 = scmp.eq.s32.totalorder %s22, 1
      %p187 = scmp.ne.s32.totalorder %s182, %s184
      %p188 = scmp.eq.s32.totalorder %s22, 0
      %p189 = por %p187, %p188
      %p190 = scmp.ne.s32.totalorder %s182, %s184
      %p191 = scmp.eq.s32.totalorder %s27, 1
      %p192 = por %p190, %p191
      %p193 = scmp.ne.s32.totalorder %s184, %s185
      %p194 = scmp.eq.s32.totalorder %s27, 0
      %p195 = por %p193, %p194
      %p196 = scmp.ne.s32.totalorder %s184, %s185
      %p197 = scmp.eq.s32.totalorder %s28, 1
      %p198 = por %p196, %p197
      %p200 = scmp.ne.s32.totalorder %s185, %s199
      %p201 = scmp.eq.s32.totalorder %s28, 0
      %p202 = por %p200, %p201
      %s204 = sadd.s32 %s203, 1
      %p207 = scmp.eq.s32.totalorder %s22, 1
      %p208 = scmp.ne.s32.totalorder %s203, %s205
      %p209 = scmp.eq.s32.totalorder %s22, 0
      %p210 = por %p208, %p209
      %p211 = scmp.ne.s32.totalorder %s203, %s205
      %p212 = scmp.eq.s32.totalorder %s27, 1
      %p213 = por %p211, %p212
      %p214 = scmp.ne.s32.totalorder %s205, %s206
      %p215 = scmp.eq.s32.totalorder %s27, 0
      %p216 = por %p214, %p215
      %p217 = scmp.ne.s32.totalorder %s205, %s206
      %p218 = scmp.eq.s32.totalorder %s28, 1
      %p219 = por %p217, %p218
      %p221 = scmp.ne.s32.totalorder %s206, %s220
      %p222 = scmp.eq.s32.totalorder %s28, 0
      %p223 = por %p221, %p222
      %s225 = sadd.s32 %s224, 1
      %p228 = scmp.eq.s32.totalorder %s22, 1
      %p229 = scmp.ne.s32.totalorder %s224, %s226
      %p230 = scmp.eq.s32.totalorder %s22, 0
      %p231 = por %p229, %p230
      %p232 = scmp.ne.s32.totalorder %s224, %s226
      %p233 = scmp.eq.s32.totalorder %s27, 1
      %p234 = por %p232, %p233
      %p235 = scmp.ne.s32.totalorder %s226, %s227
      %p236 = scmp.eq.s32.totalorder %s27, 0
      %p237 = por %p235, %p236
      %p238 = scmp.ne.s32.totalorder %s226, %s227
      %p239 = scmp.eq.s32.totalorder %s28, 1
      %p240 = por %p238, %p239
      %p242 = scmp.ne.s32.totalorder %s227, %s241
      %p243 = scmp.eq.s32.totalorder %s28, 0
      %p244 = por %p242, %p243
      %s246 = sadd.s32 %s245, 1
      %p249 = scmp.eq.s32.totalorder %s22, 1
      %p250 = scmp.ne.s32.totalorder %s245, %s247
      %p251 = scmp.eq.s32.totalorder %s22, 0
      %p252 = por %p250, %p251
      %p253 = scmp.ne.s32.totalorder %s245, %s247
      %p254 = scmp.eq.s32.totalorder %s27, 1
      %p255 = por %p253, %p254
      %p256 = scmp.ne.s32.totalorder %s247, %s248
      %p257 = scmp.eq.s32.totalorder %s27, 0
      %p258 = por %p256, %p257
      %p259 = scmp.ne.s32.totalorder %s247, %s248
      %p260 = scmp.eq.s32.totalorder %s28, 1
      %p261 = por %p259, %p260
      %p263 = scmp.ne.s32.totalorder %s248, %s262
      %p264 = scmp.eq.s32.totalorder %s28, 0
      %p265 = por %p263, %p264
      %s266 = ssub.s32 %s22, %s29
      %p267 = scmp.eq.s32.totalorder %s266, 0
      %s269 = sadd.s32 %s268, 1
      %s270 = scalar_select %p267, %s268, %s269
      %p273 = pneg %p267
      %p274 = scmp.eq.s32.totalorder %s22, 1
      %p275 = por %p273, %p274
      %p276 = scmp.ne.s32.totalorder %s268, %s271
      %p277 = scmp.eq.s32.totalorder %s22, 0
      %p278 = por %p276, %p277
      %p279 = scmp.ne.s32.totalorder %s268, %s271
      %p280 = scmp.eq.s32.totalorder %s27, 1
      %p281 = por %p279, %p280
      %p282 = scmp.ne.s32.totalorder %s271, %s272
      %p283 = scmp.eq.s32.totalorder %s27, 0
      %p284 = por %p282, %p283
      %p285 = scmp.ne.s32.totalorder %s271, %s272
      %p286 = scmp.eq.s32.totalorder %s28, 1
      %p287 = por %p285, %p286
      %p289 = scmp.ne.s32.totalorder %s272, %s288
      %p290 = scmp.eq.s32.totalorder %s28, 0
      %p291 = por %p289, %p290
      %p292 = scmp.le.s32.totalorder 1, %s22
      %p293 = scmp.lt.s32.totalorder %s22, 3
      %p294 = pnand %p292, %p293
      %p295 = pneg %p294
      // Predicated region
      $region9: #{tpu_custom_call.1} parent=5 // pred_check
        _
      $region10: #{tpu_custom_call.1} parent=5 // pred_check_branch
        %297 = sbr.rel (%p294) target = $region12
      $region11: #{tpu_custom_call.1} parent=5 // pred_region
        %s298 = ssub.s32 %s22, 1
        // Predicated region
        $region13: #{tpu_custom_call.1} parent=11 // pred_check
          %p299 = pneg %p69
        $region14: #{tpu_custom_call.1} parent=11 // pred_check_branch
          %301 = sbr.rel (%p299) target = $region16
        $region15: #{tpu_custom_call.1} parent=11 // pred_region
          %303 = vsyncadd [#allocation5], 0
          %s304 = sshll.u32 %s1, 4
          %s305 = int_to_ptr.hbm [resolvable:$true] %s304
          %s306 = sshll.u32 [#allocation4], 4
          %s307 = int_to_ptr.vmem [resolvable:$true] %s306
          %312 = dma.hbm_to_vmem [thread:$0]  %s305, 6144, %s307, [#allocation5], 128, 128, 8
        $region16: #{tpu_custom_call.1} parent=11 // pred_fallthru
          _
        // Predicated region
        $region17: #{tpu_custom_call.1} parent=11 // pred_check
          %p313 = pneg %p90
        $region18: #{tpu_custom_call.1} parent=11 // pred_check_branch
          %315 = sbr.rel (%p313) target = $region20
        $region19: #{tpu_custom_call.1} parent=11 // pred_region
          _
        $region20: #{tpu_custom_call.1} parent=11 // pred_fallthru
          _
        // Predicated region
        $region21: #{tpu_custom_call.1} parent=11 // pred_check
          %p316 = pneg %p111
        $region22: #{tpu_custom_call.1} parent=11 // pred_check_branch
          %318 = sbr.rel (%p316) target = $region24
        $region23: #{tpu_custom_call.1} parent=11 // pred_region
          %320 = vsyncadd [#allocation8], 0
          %s321 = sshll.u32 %s3, 4
          %s322 = int_to_ptr.hbm [resolvable:$true] %s321
          %s323 = sshll.u32 [#allocation7], 4
          %s324 = int_to_ptr.vmem [resolvable:$true] %s323
          %329 = dma.hbm_to_vmem [thread:$0]  %s322, 12288, %s324, [#allocation8], 128, 128, 8
        $region24: #{tpu_custom_call.1} parent=11 // pred_fallthru
          _
        // Predicated region
        $region25: #{tpu_custom_call.1} parent=11 // pred_check
          %p330 = pneg %p132
        $region26: #{tpu_custom_call.1} parent=11 // pred_check_branch
          %332 = sbr.rel (%p330) target = $region28
        $region27: #{tpu_custom_call.1} parent=11 // pred_region
          _
        $region28: #{tpu_custom_call.1} parent=11 // pred_fallthru
          _
        // Predicated region
        $region29: #{tpu_custom_call.1} parent=11 // pred_check
          %p333 = pneg %p153
        $region30: #{tpu_custom_call.1} parent=11 // pred_check_branch
          %335 = sbr.rel (%p333) target = $region32
        $region31: #{tpu_custom_call.1} parent=11 // pred_region
          _
        $region32: #{tpu_custom_call.1} parent=11 // pred_fallthru
          _
        // Predicated region
        $region33: #{tpu_custom_call.1} parent=11 // pred_check
          %p336 = pneg %p174
        $region34: #{tpu_custom_call.1} parent=11 // pred_check_branch
          %338 = sbr.rel (%p336) target = $region36
        $region35: #{tpu_custom_call.1} parent=11 // pred_region
          _
        $region36: #{tpu_custom_call.1} parent=11 // pred_fallthru
          _
        // Predicated region
        $region37: #{tpu_custom_call.1} parent=11 // pred_check
          %p339 = pneg %p195
        $region38: #{tpu_custom_call.1} parent=11 // pred_check_branch
          %341 = sbr.rel (%p339) target = $region40
        $region39: #{tpu_custom_call.1} parent=11 // pred_region
          _
        $region40: #{tpu_custom_call.1} parent=11 // pred_fallthru
          _
        // Predicated region
        $region41: #{tpu_custom_call.1} parent=11 // pred_check
          %p342 = pneg %p216
        $region42: #{tpu_custom_call.1} parent=11 // pred_check_branch
          %344 = sbr.rel (%p342) target = $region44
        $region43: #{tpu_custom_call.1} parent=11 // pred_region
          _
        $region44: #{tpu_custom_call.1} parent=11 // pred_fallthru
          _
        // Predicated region
        $region45: #{tpu_custom_call.1} parent=11 // pred_check
          %p345 = pneg %p237
        $region46: #{tpu_custom_call.1} parent=11 // pred_check_branch
          %347 = sbr.rel (%p345) target = $region48
        $region47: #{tpu_custom_call.1} parent=11 // pred_region
          _
        $region48: #{tpu_custom_call.1} parent=11 // pred_fallthru
          _
        // Predicated region
        $region49: #{tpu_custom_call.1} parent=11 // pred_check
          %p348 = pneg %p258
        $region50: #{tpu_custom_call.1} parent=11 // pred_check_branch
          %350 = sbr.rel (%p348) target = $region52
        $region51: #{tpu_custom_call.1} parent=11 // pred_region
          _
        $region52: #{tpu_custom_call.1} parent=11 // pred_fallthru
          _
      $region12: #{tpu_custom_call.1} parent=5 // pred_fallthru
        _
      %p351 = scmp.lt.s32.totalorder %s22, 2
      // Predicated region
      $region53: #{tpu_custom_call.1} parent=5 // pred_check
        %p352 = pneg %p351
      $region54: #{tpu_custom_call.1} parent=5 // pred_check_branch
        %354 = sbr.rel (%p352) target = $region56
      $region55: #{tpu_custom_call.1} parent=5 // pred_region
        // Predicated region
        $region57: #{tpu_custom_call.1} parent=55 // pred_check
          %p355 = pneg %p42
        $region58: #{tpu_custom_call.1} parent=55 // pred_check_branch
          %357 = sbr.rel (%p355) target = $region60
        $region59: #{tpu_custom_call.1} parent=55 // pred_region
          %p358 = scmp.lt.s32.totalorder %s22, 1
          %s359 = scalar_select %p358, %s22, 1
          %s360 = smul.addr %s359, 8
          %s361 = scalar_lea.vmem %s0, %s360
        $region60: #{tpu_custom_call.1} parent=55 // pred_fallthru
          _
      $region56: #{tpu_custom_call.1} parent=5 // pred_fallthru
        _
      %p362 = scmp.le.s32.totalorder 1, %s22
      %p363 = scmp.lt.s32.totalorder %s22, 3
      %p364 = pnand %p362, %p363
      %p365 = pneg %p364
      // Predicated region
      $region61: #{tpu_custom_call.1} parent=5 // pred_check
        _
      $region62: #{tpu_custom_call.1} parent=5 // pred_check_branch
        %367 = sbr.rel (%p364) target = $region64
      $region63: #{tpu_custom_call.1} parent=5 // pred_region
        %s368 = ssub.s32 %s22, 1
        // Predicated region
        $region65: #{tpu_custom_call.1} parent=63 // pred_check
          %p369 = pneg %p69
        $region66: #{tpu_custom_call.1} parent=63 // pred_check_branch
          %371 = sbr.rel (%p369) target = $region68
        $region67: #{tpu_custom_call.1} parent=63 // pred_region
          %373 = dma.done [#allocation5], 6144
        $region68: #{tpu_custom_call.1} parent=63 // pred_fallthru
          _
        // Predicated region
        $region69: #{tpu_custom_call.1} parent=63 // pred_check
          %p374 = pneg %p111
        $region70: #{tpu_custom_call.1} parent=63 // pred_check_branch
          %376 = sbr.rel (%p374) target = $region72
        $region71: #{tpu_custom_call.1} parent=63 // pred_region
          %378 = dma.done [#allocation8], 12288
        $region72: #{tpu_custom_call.1} parent=63 // pred_fallthru
          _
        %p379 = scmp.lt.s32.totalorder %s27, 1
        %s380 = scalar_select %p379, %s27, 1
        %s381 = smul.addr %s380, 8
        %s382 = scalar_lea.vmem %s0, %s381
        %p383 = pneg %p48
        %p384 = pneg %p45
        %p385 = pneg %p69
        %p386 = pneg %p66
        %p387 = pneg %p90
        %p388 = pneg %p87
        %p389 = pneg %p111
        %p390 = pneg %p108
        %p391 = pneg %p132
        %p392 = pneg %p129
        %p393 = pneg %p153
        %p394 = pneg %p150
        %p395 = pneg %p174
        %p396 = pneg %p171
        %p397 = pneg %p195
        %p398 = pneg %p192
        %p399 = pneg %p216
        %p400 = pneg %p213
        %p401 = pneg %p237
        %p402 = pneg %p234
        %p403 = pneg %p258
        %p404 = pneg %p255
        %p405 = pneg %p284
        %p406 = pneg %p281
        %s407 = sand.u32 %s271, 1
        %s408 = scalar_lea.sflag [#allocation6], %s407
        %s409 = sand.u32 %s271, 1
        %s410 = smul.addr %s409, 16
        %s411 = scalar_lea.vmem [#allocation9], %s410
        %p412 = scmp.lt.s32.totalorder %s27, 1
        %s413 = scalar_select %p412, %s27, 1
        %s414 = smul.addr %s413, 8
        %s415 = scalar_lea.vmem %s0, %s414
        %416 = vst [vmem:[#allocation2] sm:$0xff] 0.0
        %417 = vst [vmem:[#allocation2 + $0x8] sm:$0x3] 0.0
        %v418 = vld [vmem:[%s415] sm:$0xff]
        %419 = vst [vmem:[#allocation2 + $0x1] sm:$0xff] %v418
        %v420 = vld [vmem:[#allocation2] sm:$0xff]
        %v421 = vpack.c.bf16 %v420, %v420
        %v422 = vld [vmem:[#allocation4] sm:$0xff]
        %v423 = vld [vmem:[#allocation4 + $0x8] sm:$0xff]
        %v424 = vld [vmem:[#allocation4 + $0x10] sm:$0xff]
        %v425 = vld [vmem:[#allocation4 + $0x18] sm:$0xff]
        %v426 = vld [vmem:[#allocation4 + $0x20] sm:$0xff]
        %v427 = vld [vmem:[#allocation4 + $0x28] sm:$0xff]
        %v428 = vld [vmem:[#allocation4 + $0x30] sm:$0xff]
        %v429 = vld [vmem:[#allocation4 + $0x38] sm:$0xff]
        %v430 = vld [vmem:[#allocation4 + $0x40] sm:$0xff]
        %v431 = vld [vmem:[#allocation4 + $0x48] sm:$0xff]
        %v432 = vld [vmem:[#allocation4 + $0x50] sm:$0xff]
        %v433 = vld [vmem:[#allocation4 + $0x58] sm:$0xff]
        %v434 = vld [vmem:[#allocation4 + $0x60] sm:$0xff]
        %v435 = vld [vmem:[#allocation4 + $0x68] sm:$0xff]
        %v436 = vld [vmem:[#allocation4 + $0x70] sm:$0xff]
        %v437 = vld [vmem:[#allocation4 + $0x78] sm:$0xff]
        %v438 = vld [vmem:[#allocation2 + $0x1] sm:$0xff]
        %v439 = vpack.c.bf16 %v438, %v438
        %s440 = scalar_lea.vmem [#allocation4], 128
        %v441 = vld [vmem:[%s440] sm:$0xff]
        %v442 = vld [vmem:[%s440 + $0x8] sm:$0xff]
        %v443 = vld [vmem:[%s440 + $0x10] sm:$0xff]
        %v444 = vld [vmem:[%s440 + $0x18] sm:$0xff]
        %v445 = vld [vmem:[%s440 + $0x20] sm:$0xff]
        %v446 = vld [vmem:[%s440 + $0x28] sm:$0xff]
        %v447 = vld [vmem:[%s440 + $0x30] sm:$0xff]
        %v448 = vld [vmem:[%s440 + $0x38] sm:$0xff]
        %v449 = vld [vmem:[%s440 + $0x40] sm:$0xff]
        %v450 = vld [vmem:[%s440 + $0x48] sm:$0xff]
        %v451 = vld [vmem:[%s440 + $0x50] sm:$0xff]
        %v452 = vld [vmem:[%s440 + $0x58] sm:$0xff]
        %v453 = vld [vmem:[%s440 + $0x60] sm:$0xff]
        %v454 = vld [vmem:[%s440 + $0x68] sm:$0xff]
        %v455 = vld [vmem:[%s440 + $0x70] sm:$0xff]
        %v456 = vld [vmem:[%s440 + $0x78] sm:$0xff]
        %v473 = vunpack.c.l.b16 %v441
        %v474 = vunpack.c.h.b16 %v441
        %v475 = vunpack.c.l.b16 %v442
        %v476 = vunpack.c.h.b16 %v442
        %v477 = vunpack.c.l.b16 %v443
        %v478 = vunpack.c.h.b16 %v443
        %v479 = vunpack.c.l.b16 %v444
        %v480 = vunpack.c.h.b16 %v444
        %v481 = vunpack.c.l.b16 %v445
        %v482 = vunpack.c.h.b16 %v445
        %v483 = vunpack.c.l.b16 %v446
        %v484 = vunpack.c.h.b16 %v446
        %v485 = vunpack.c.l.b16 %v447
        %v486 = vunpack.c.h.b16 %v447
        %v487 = vunpack.c.l.b16 %v448
        %v488 = vunpack.c.h.b16 %v448
        %v489 = vunpack.c.l.b16 %v449
        %v490 = vunpack.c.h.b16 %v449
        %v491 = vunpack.c.l.b16 %v450
        %v492 = vunpack.c.h.b16 %v450
        %v493 = vunpack.c.l.b16 %v451
        %v494 = vunpack.c.h.b16 %v451
        %v495 = vunpack.c.l.b16 %v452
        %v496 = vunpack.c.h.b16 %v452
        %v497 = vunpack.c.l.b16 %v453
        %v498 = vunpack.c.h.b16 %v453
        %v499 = vunpack.c.l.b16 %v454
        %v500 = vunpack.c.h.b16 %v454
        %v501 = vunpack.c.l.b16 %v455
        %v502 = vunpack.c.h.b16 %v455
        %v503 = vunpack.c.l.b16 %v456
        %v504 = vunpack.c.h.b16 %v456
        %v505 = vpack.c.b16 %v475, %v473
        %v506 = vpack.c.b16 %v476, %v474
        %v507 = vpack.c.b16 %v479, %v477
        %v508 = vpack.c.b16 %v480, %v478
        %v509 = vpack.c.b16 %v483, %v481
        %v510 = vpack.c.b16 %v484, %v482
        %v511 = vpack.c.b16 %v487, %v485
        %v512 = vpack.c.b16 %v488, %v486
        %v513 = vpack.c.b16 %v491, %v489
        %v514 = vpack.c.b16 %v492, %v490
        %v515 = vpack.c.b16 %v495, %v493
        %v516 = vpack.c.b16 %v496, %v494
        %v517 = vpack.c.b16 %v499, %v497
        %v518 = vpack.c.b16 %v500, %v498
        %v519 = vpack.c.b16 %v503, %v501
        %v520 = vpack.c.b16 %v504, %v502
        %537 = vmatpush.bf16.msra.mxu0 %v519
        %538 = vmatpush.bf16.msra.mxu0 %v517
        %539 = vmatpush.bf16.msra.mxu0 %v515
        %540 = vmatpush.bf16.msra.mxu0 %v513
        %541 = vmatpush.bf16.msra.mxu0 %v511
        %542 = vmatpush.bf16.msra.mxu0 %v509
        %543 = vmatpush.bf16.msra.mxu0 %v507
        %544 = vmatpush.bf16.msra.mxu0 %v505
        %545 = vmatmul.bf16.gmra.mxu0 %v439
        %v546 = vpop.f32.mrf.mxu0
        %v547 = vadd.f32 0.0, %v546
        %v548 = vpop.f32.mrf.mxu0
        %549 = vdwg.mxu0
        %550 = vmatpush.bf16.msra.mxu0 %v520
        %551 = vmatpush.bf16.msra.mxu0 %v518
        %552 = vmatpush.bf16.msra.mxu0 %v516
        %553 = vmatpush.bf16.msra.mxu0 %v514
        %554 = vmatpush.bf16.msra.mxu0 %v512
        %555 = vmatpush.bf16.msra.mxu0 %v510
        %556 = vmatpush.bf16.msra.mxu0 %v508
        %557 = vmatpush.bf16.msra.mxu0 %v506
        %558 = vmatmul.bf16.gmra.mxu0 %v439
        %v559 = vpop.f32.mrf.mxu0
        %v560 = vadd.f32 0.0, %v559
        %v561 = vpop.f32.mrf.mxu0
        %562 = vdwg.mxu0
        %v579 = vunpack.c.l.b16 %v422
        %v580 = vunpack.c.h.b16 %v422
        %v581 = vunpack.c.l.b16 %v423
        %v582 = vunpack.c.h.b16 %v423
        %v583 = vunpack.c.l.b16 %v424
        %v584 = vunpack.c.h.b16 %v424
        %v585 = vunpack.c.l.b16 %v425
        %v586 = vunpack.c.h.b16 %v425
        %v587 = vunpack.c.l.b16 %v426
        %v588 = vunpack.c.h.b16 %v426
        %v589 = vunpack.c.l.b16 %v427
        %v590 = vunpack.c.h.b16 %v427
        %v591 = vunpack.c.l.b16 %v428
        %v592 = vunpack.c.h.b16 %v428
        %v593 = vunpack.c.l.b16 %v429
        %v594 = vunpack.c.h.b16 %v429
        %v595 = vunpack.c.l.b16 %v430
        %v596 = vunpack.c.h.b16 %v430
        %v597 = vunpack.c.l.b16 %v431
        %v598 = vunpack.c.h.b16 %v431
        %v599 = vunpack.c.l.b16 %v432
        %v600 = vunpack.c.h.b16 %v432
        %v601 = vunpack.c.l.b16 %v433
        %v602 = vunpack.c.h.b16 %v433
        %v603 = vunpack.c.l.b16 %v434
        %v604 = vunpack.c.h.b16 %v434
        %v605 = vunpack.c.l.b16 %v435
        %v606 = vunpack.c.h.b16 %v435
        %v607 = vunpack.c.l.b16 %v436
        %v608 = vunpack.c.h.b16 %v436
        %v609 = vunpack.c.l.b16 %v437
        %v610 = vunpack.c.h.b16 %v437
        %v611 = vpack.c.b16 %v581, %v579
        %v612 = vpack.c.b16 %v582, %v580
        %v613 = vpack.c.b16 %v585, %v583
        %v614 = vpack.c.b16 %v586, %v584
        %v615 = vpack.c.b16 %v589, %v587
        %v616 = vpack.c.b16 %v590, %v588
        %v617 = vpack.c.b16 %v593, %v591
        %v618 = vpack.c.b16 %v594, %v592
        %v619 = vpack.c.b16 %v597, %v595
        %v620 = vpack.c.b16 %v598, %v596
        %v621 = vpack.c.b16 %v601, %v599
        %v622 = vpack.c.b16 %v602, %v600
        %v623 = vpack.c.b16 %v605, %v603
        %v624 = vpack.c.b16 %v606, %v604
        %v625 = vpack.c.b16 %v609, %v607
        %v626 = vpack.c.b16 %v610, %v608
        %643 = vmatpush.bf16.msra.mxu0 %v625
        %644 = vmatpush.bf16.msra.mxu0 %v623
        %645 = vmatpush.bf16.msra.mxu0 %v621
        %646 = vmatpush.bf16.msra.mxu0 %v619
        %647 = vmatpush.bf16.msra.mxu0 %v617
        %648 = vmatpush.bf16.msra.mxu0 %v615
        %649 = vmatpush.bf16.msra.mxu0 %v613
        %650 = vmatpush.bf16.msra.mxu0 %v611
        %651 = vmatmul.bf16.gmra.mxu0 %v421
        %v652 = vpop.f32.mrf.mxu0
        %v653 = vadd.f32 %v547, %v652
        %v654 = vpop.f32.mrf.mxu0
        %655 = vdwg.mxu0
        %656 = vmatpush.bf16.msra.mxu0 %v626
        %657 = vmatpush.bf16.msra.mxu0 %v624
        %658 = vmatpush.bf16.msra.mxu0 %v622
        %659 = vmatpush.bf16.msra.mxu0 %v620
        %660 = vmatpush.bf16.msra.mxu0 %v618
        %661 = vmatpush.bf16.msra.mxu0 %v616
        %662 = vmatpush.bf16.msra.mxu0 %v614
        %663 = vmatpush.bf16.msra.mxu0 %v612
        %664 = vmatmul.bf16.gmra.mxu0 %v421
        %v665 = vpop.f32.mrf.mxu0
        %v666 = vadd.f32 %v560, %v665
        %v667 = vpop.f32.mrf.mxu0
        %668 = vdwg.mxu0
        %v669 = vld [vmem:[#allocation2 + $0x2] sm:$0xff]
        %v670 = vpack.c.bf16 %v669, %v669
        %s671 = scalar_lea.vmem [#allocation4], 256
        %v672 = vld [vmem:[%s671] sm:$0xff]
        %v673 = vld [vmem:[%s671 + $0x8] sm:$0xff]
        %v674 = vld [vmem:[%s671 + $0x10] sm:$0xff]
        %v675 = vld [vmem:[%s671 + $0x18] sm:$0xff]
        %v676 = vld [vmem:[%s671 + $0x20] sm:$0xff]
        %v677 = vld [vmem:[%s671 + $0x28] sm:$0xff]
        %v678 = vld [vmem:[%s671 + $0x30] sm:$0xff]
        %v679 = vld [vmem:[%s671 + $0x38] sm:$0xff]
        %v680 = vld [vmem:[%s671 + $0x40] sm:$0xff]
        %v681 = vld [vmem:[%s671 + $0x48] sm:$0xff]
        %v682 = vld [vmem:[%s671 + $0x50] sm:$0xff]
        %v683 = vld [vmem:[%s671 + $0x58] sm:$0xff]
        %v684 = vld [vmem:[%s671 + $0x60] sm:$0xff]
        %v685 = vld [vmem:[%s671 + $0x68] sm:$0xff]
        %v686 = vld [vmem:[%s671 + $0x70] sm:$0xff]
        %v687 = vld [vmem:[%s671 + $0x78] sm:$0xff]
        %v704 = vunpack.c.l.b16 %v672
        %v705 = vunpack.c.h.b16 %v672
        %v706 = vunpack.c.l.b16 %v673
        %v707 = vunpack.c.h.b16 %v673
        %v708 = vunpack.c.l.b16 %v674
        %v709 = vunpack.c.h.b16 %v674
        %v710 = vunpack.c.l.b16 %v675
        %v711 = vunpack.c.h.b16 %v675
        %v712 = vunpack.c.l.b16 %v676
        %v713 = vunpack.c.h.b16 %v676
        %v714 = vunpack.c.l.b16 %v677
        %v715 = vunpack.c.h.b16 %v677
        %v716 = vunpack.c.l.b16 %v678
        %v717 = vunpack.c.h.b16 %v678
        %v718 = vunpack.c.l.b16 %v679
        %v719 = vunpack.c.h.b16 %v679
        %v720 = vunpack.c.l.b16 %v680
        %v721 = vunpack.c.h.b16 %v680
        %v722 = vunpack.c.l.b16 %v681
        %v723 = vunpack.c.h.b16 %v681
        %v724 = vunpack.c.l.b16 %v682
        %v725 = vunpack.c.h.b16 %v682
        %v726 = vunpack.c.l.b16 %v683
        %v727 = vunpack.c.h.b16 %v683
        %v728 = vunpack.c.l.b16 %v684
        %v729 = vunpack.c.h.b16 %v684
        %v730 = vunpack.c.l.b16 %v685
        %v731 = vunpack.c.h.b16 %v685
        %v732 = vunpack.c.l.b16 %v686
        %v733 = vunpack.c.h.b16 %v686
        %v734 = vunpack.c.l.b16 %v687
        %v735 = vunpack.c.h.b16 %v687
        %v736 = vpack.c.b16 %v706, %v704
        %v737 = vpack.c.b16 %v707, %v705
        %v738 = vpack.c.b16 %v710, %v708
        %v739 = vpack.c.b16 %v711, %v709
        %v740 = vpack.c.b16 %v714, %v712
        %v741 = vpack.c.b16 %v715, %v713
        %v742 = vpack.c.b16 %v718, %v716
        %v743 = vpack.c.b16 %v719, %v717
        %v744 = vpack.c.b16 %v722, %v720
        %v745 = vpack.c.b16 %v723, %v721
        %v746 = vpack.c.b16 %v726, %v724
        %v747 = vpack.c.b16 %v727, %v725
        %v748 = vpack.c.b16 %v730, %v728
        %v749 = vpack.c.b16 %v731, %v729
        %v750 = vpack.c.b16 %v734, %v732
        %v751 = vpack.c.b16 %v735, %v733
        %768 = vmatpush.bf16.msra.mxu0 %v750
        %769 = vmatpush.bf16.msra.mxu0 %v748
        %770 = vmatpush.bf16.msra.mxu0 %v746
        %771 = vmatpush.bf16.msra.mxu0 %v744
        %772 = vmatpush.bf16.msra.mxu0 %v742
        %773 = vmatpush.bf16.msra.mxu0 %v740
        %774 = vmatpush.bf16.msra.mxu0 %v738
        %775 = vmatpush.bf16.msra.mxu0 %v736
        %776 = vmatmul.bf16.gmra.mxu0 %v670
        %v777 = vpop.f32.mrf.mxu0
        %v778 = vadd.f32 0.0, %v777
        %v779 = vpop.f32.mrf.mxu0
        %780 = vdwg.mxu0
        %781 = vmatpush.bf16.msra.mxu0 %v751
        %782 = vmatpush.bf16.msra.mxu0 %v749
        %783 = vmatpush.bf16.msra.mxu0 %v747
        %784 = vmatpush.bf16.msra.mxu0 %v745
        %785 = vmatpush.bf16.msra.mxu0 %v743
        %786 = vmatpush.bf16.msra.mxu0 %v741
        %787 = vmatpush.bf16.msra.mxu0 %v739
        %788 = vmatpush.bf16.msra.mxu0 %v737
        %789 = vmatmul.bf16.gmra.mxu0 %v670
        %v790 = vpop.f32.mrf.mxu0
        %v791 = vadd.f32 0.0, %v790
        %v792 = vpop.f32.mrf.mxu0
        %793 = vdwg.mxu0
        %v794 = vadd.f32 %v653, %v778
        %v795 = vadd.f32 %v666, %v791
        %v796 = vld [vmem:[%s2] sm:$0x3]
        %v798 = vperm.slane %v796, 0
        %v799 = vperm.slane %v796, 1
        %v802 = vadd.f32 %v794, %v798
        %v803 = vadd.f32 %v795, %v799
        %v804 = vmax.f32 %v802, 0.0
        %v805 = vmax.f32 %v803, 0.0
        %806 = vst [vmem:[#allocation3] sm:$0xff] 0.0
        %807 = vst [vmem:[#allocation3 + $0x8] sm:$0xff] 0.0
        %808 = vst [vmem:[#allocation3 + $0x10] sm:$0x3] 0.0
        %809 = vst [vmem:[#allocation3 + $0x18] sm:$0x3] 0.0
        %v812 = vrot.slane %v804, 7
        %v813 = vrot.slane %v805, 7
        %816 = vst [vmem:[#allocation3] sm:$0xfe] %v812
        %817 = vst [vmem:[#allocation3 + $0x8] sm:$0xfe] %v813
        %818 = vst [vmem:[#allocation3 + $0x10] sm:$0x1] %v812
        %819 = vst [vmem:[#allocation3 + $0x18] sm:$0x1] %v813
        %v820 = vld [vmem:[#allocation3] sm:$0xff]
        %v821 = vld [vmem:[#allocation3 + $0x8] sm:$0xff]
        %v822 = vpack.c.bf16 %v820, %v820
        %v823 = vpack.c.bf16 %v821, %v821
        %v824 = vld [vmem:[#allocation7] sm:$0xff]
        %v825 = vld [vmem:[#allocation7 + $0x8] sm:$0xff]
        %v826 = vld [vmem:[#allocation7 + $0x10] sm:$0xff]
        %v827 = vld [vmem:[#allocation7 + $0x18] sm:$0xff]
        %v828 = vld [vmem:[#allocation7 + $0x20] sm:$0xff]
        %v829 = vld [vmem:[#allocation7 + $0x28] sm:$0xff]
        %v830 = vld [vmem:[#allocation7 + $0x30] sm:$0xff]
        %v831 = vld [vmem:[#allocation7 + $0x38] sm:$0xff]
        %v832 = vld [vmem:[#allocation7 + $0x40] sm:$0xff]
        %v833 = vld [vmem:[#allocation7 + $0x48] sm:$0xff]
        %v834 = vld [vmem:[#allocation7 + $0x50] sm:$0xff]
        %v835 = vld [vmem:[#allocation7 + $0x58] sm:$0xff]
        %v836 = vld [vmem:[#allocation7 + $0x60] sm:$0xff]
        %v837 = vld [vmem:[#allocation7 + $0x68] sm:$0xff]
        %v838 = vld [vmem:[#allocation7 + $0x70] sm:$0xff]
        %v839 = vld [vmem:[#allocation7 + $0x78] sm:$0xff]
        %v840 = vld [vmem:[#allocation7 + $0x80] sm:$0xff]
        %v841 = vld [vmem:[#allocation7 + $0x88] sm:$0xff]
        %v842 = vld [vmem:[#allocation7 + $0x90] sm:$0xff]
        %v843 = vld [vmem:[#allocation7 + $0x98] sm:$0xff]
        %v844 = vld [vmem:[#allocation7 + $0xa0] sm:$0xff]
        %v845 = vld [vmem:[#allocation7 + $0xa8] sm:$0xff]
        %v846 = vld [vmem:[#allocation7 + $0xb0] sm:$0xff]
        %v847 = vld [vmem:[#allocation7 + $0xb8] sm:$0xff]
        %v848 = vld [vmem:[#allocation7 + $0xc0] sm:$0xff]
        %v849 = vld [vmem:[#allocation7 + $0xc8] sm:$0xff]
        %v850 = vld [vmem:[#allocation7 + $0xd0] sm:$0xff]
        %v851 = vld [vmem:[#allocation7 + $0xd8] sm:$0xff]
        %v852 = vld [vmem:[#allocation7 + $0xe0] sm:$0xff]
        %v853 = vld [vmem:[#allocation7 + $0xe8] sm:$0xff]
        %v854 = vld [vmem:[#allocation7 + $0xf0] sm:$0xff]
        %v855 = vld [vmem:[#allocation7 + $0xf8] sm:$0xff]
        %v856 = vld [vmem:[#allocation3] sm:$0xfe]
        %v857 = vld [vmem:[#allocation3 + $0x8] sm:$0xfe]
        %v858 = vld [vmem:[#allocation3 + $0x10] sm:$0x1]
        %v859 = vld [vmem:[#allocation3 + $0x18] sm:$0x1]
        %v860 = vpack.c.bf16 %v858, %v856
        %v861 = vpack.c.bf16 %v859, %v857
        %s862 = scalar_lea.vmem [#allocation7], 256
        %v863 = vld [vmem:[%s862] sm:$0xff]
        %v864 = vld [vmem:[%s862 + $0x8] sm:$0xff]
        %v865 = vld [vmem:[%s862 + $0x10] sm:$0xff]
        %v866 = vld [vmem:[%s862 + $0x18] sm:$0xff]
        %v867 = vld [vmem:[%s862 + $0x20] sm:$0xff]
        %v868 = vld [vmem:[%s862 + $0x28] sm:$0xff]
        %v869 = vld [vmem:[%s862 + $0x30] sm:$0xff]
        %v870 = vld [vmem:[%s862 + $0x38] sm:$0xff]
        %v871 = vld [vmem:[%s862 + $0x40] sm:$0xff]
        %v872 = vld [vmem:[%s862 + $0x48] sm:$0xff]
        %v873 = vld [vmem:[%s862 + $0x50] sm:$0xff]
        %v874 = vld [vmem:[%s862 + $0x58] sm:$0xff]
        %v875 = vld [vmem:[%s862 + $0x60] sm:$0xff]
        %v876 = vld [vmem:[%s862 + $0x68] sm:$0xff]
        %v877 = vld [vmem:[%s862 + $0x70] sm:$0xff]
        %v878 = vld [vmem:[%s862 + $0x78] sm:$0xff]
        %v879 = vld [vmem:[%s862 + $0x80] sm:$0xff]
        %v880 = vld [vmem:[%s862 + $0x88] sm:$0xff]
        %v881 = vld [vmem:[%s862 + $0x90] sm:$0xff]
        %v882 = vld [vmem:[%s862 + $0x98] sm:$0xff]
        %v883 = vld [vmem:[%s862 + $0xa0] sm:$0xff]
        %v884 = vld [vmem:[%s862 + $0xa8] sm:$0xff]
        %v885 = vld [vmem:[%s862 + $0xb0] sm:$0xff]
        %v886 = vld [vmem:[%s862 + $0xb8] sm:$0xff]
        %v887 = vld [vmem:[%s862 + $0xc0] sm:$0xff]
        %v888 = vld [vmem:[%s862 + $0xc8] sm:$0xff]
        %v889 = vld [vmem:[%s862 + $0xd0] sm:$0xff]
        %v890 = vld [vmem:[%s862 + $0xd8] sm:$0xff]
        %v891 = vld [vmem:[%s862 + $0xe0] sm:$0xff]
        %v892 = vld [vmem:[%s862 + $0xe8] sm:$0xff]
        %v893 = vld [vmem:[%s862 + $0xf0] sm:$0xff]
        %v894 = vld [vmem:[%s862 + $0xf8] sm:$0xff]
        %v896 = vshrl.u32 %v860, 16
        %v898 = vshll.u32 %v860, 16
        %v900 = vrot.slane %v898, 1
        %v901 = vor.u32 %v896, %v900
        %v903 = vshrl.u32 %v861, 16
        %v905 = vshll.u32 %v861, 16
        %v907 = vrot.slane %v905, 1
        %v908 = vor.u32 %v903, %v907
        %v943 = vunpack.c.l.b16 %v863
        %v944 = vunpack.c.h.b16 %v863
        %v945 = vunpack.c.l.b16 %v864
        %v946 = vunpack.c.h.b16 %v864
        %v947 = vunpack.c.l.b16 %v865
        %v948 = vunpack.c.h.b16 %v865
        %v949 = vunpack.c.l.b16 %v866
        %v950 = vunpack.c.h.b16 %v866
        %v951 = vunpack.c.l.b16 %v867
        %v952 = vunpack.c.h.b16 %v867
        %v953 = vunpack.c.l.b16 %v868
        %v954 = vunpack.c.h.b16 %v868
        %v955 = vunpack.c.l.b16 %v869
        %v956 = vunpack.c.h.b16 %v869
        %v957 = vunpack.c.l.b16 %v870
        %v958 = vunpack.c.h.b16 %v870
        %v959 = vunpack.c.l.b16 %v871
        %v960 = vunpack.c.h.b16 %v871
        %v961 = vunpack.c.l.b16 %v872
        %v962 = vunpack.c.h.b16 %v872
        %v963 = vunpack.c.l.b16 %v873
        %v964 = vunpack.c.h.b16 %v873
        %v965 = vunpack.c.l.b16 %v874
        %v966 = vunpack.c.h.b16 %v874
        %v967 = vunpack.c.l.b16 %v875
        %v968 = vunpack.c.h.b16 %v875
        %v969 = vunpack.c.l.b16 %v876
        %v970 = vunpack.c.h.b16 %v876
        %v971 = vunpack.c.l.b16 %v877
        %v972 = vunpack.c.h.b16 %v877
        %v973 = vunpack.c.l.b16 %v878
        %v974 = vunpack.c.h.b16 %v878
        %v975 = vunpack.c.l.b16 %v879
        %v976 = vunpack.c.h.b16 %v879
        %v977 = vunpack.c.l.b16 %v880
        %v978 = vunpack.c.h.b16 %v880
        %v979 = vunpack.c.l.b16 %v881
        %v980 = vunpack.c.h.b16 %v881
        %v981 = vunpack.c.l.b16 %v882
        %v982 = vunpack.c.h.b16 %v882
        %v983 = vunpack.c.l.b16 %v883
        %v984 = vunpack.c.h.b16 %v883
        %v985 = vunpack.c.l.b16 %v884
        %v986 = vunpack.c.h.b16 %v884
        %v987 = vunpack.c.l.b16 %v885
        %v988 = vunpack.c.h.b16 %v885
        %v989 = vunpack.c.l.b16 %v886
        %v990 = vunpack.c.h.b16 %v886
        %v991 = vunpack.c.l.b16 %v887
        %v992 = vunpack.c.h.b16 %v887
        %v993 = vunpack.c.l.b16 %v888
        %v994 = vunpack.c.h.b16 %v888
        %v995 = vunpack.c.l.b16 %v889
        %v996 = vunpack.c.h.b16 %v889
        %v997 = vunpack.c.l.b16 %v890
        %v998 = vunpack.c.h.b16 %v890
        %v999 = vunpack.c.l.b16 %v891
        %v1000 = vunpack.c.h.b16 %v891
        %v1001 = vunpack.c.l.b16 %v892
        %v1002 = vunpack.c.h.b16 %v892
        %v1003 = vunpack.c.l.b16 %v893
        %v1004 = vunpack.c.h.b16 %v893
        %v1005 = vunpack.c.l.b16 %v894
        %v1006 = vunpack.c.h.b16 %v894
        %v1007 = vpack.c.b16 %v945, %v943
        %v1008 = vpack.c.b16 %v946, %v944
        %v1009 = vpack.c.b16 %v949, %v947
        %v1010 = vpack.c.b16 %v950, %v948
        %v1011 = vpack.c.b16 %v953, %v951
        %v1012 = vpack.c.b16 %v954, %v952
        %v1013 = vpack.c.b16 %v957, %v955
        %v1014 = vpack.c.b16 %v958, %v956
        %v1015 = vpack.c.b16 %v961, %v959
        %v1016 = vpack.c.b16 %v962, %v960
        %v1017 = vpack.c.b16 %v965, %v963
        %v1018 = vpack.c.b16 %v966, %v964
        %v1019 = vpack.c.b16 %v969, %v967
        %v1020 = vpack.c.b16 %v970, %v968
        %v1021 = vpack.c.b16 %v973, %v971
        %v1022 = vpack.c.b16 %v974, %v972
        %v1023 = vpack.c.b16 %v977, %v975
        %v1024 = vpack.c.b16 %v978, %v976
        %v1025 = vpack.c.b16 %v981, %v979
        %v1026 = vpack.c.b16 %v982, %v980
        %v1027 = vpack.c.b16 %v985, %v983
        %v1028 = vpack.c.b16 %v986, %v984
        %v1029 = vpack.c.b16 %v989, %v987
        %v1030 = vpack.c.b16 %v990, %v988
        %v1031 = vpack.c.b16 %v993, %v991
        %v1032 = vpack.c.b16 %v994, %v992
        %v1033 = vpack.c.b16 %v997, %v995
        %v1034 = vpack.c.b16 %v998, %v996
        %v1035 = vpack.c.b16 %v1001, %v999
        %v1036 = vpack.c.b16 %v1002, %v1000
        %v1037 = vpack.c.b16 %v1005, %v1003
        %v1038 = vpack.c.b16 %v1006, %v1004
        %1071 = vmatpush.bf16.msra.mxu0 %v1021
        %1072 = vmatpush.bf16.msra.mxu0 %v1019
        %1073 = vmatpush.bf16.msra.mxu0 %v1017
        %1074 = vmatpush.bf16.msra.mxu0 %v1015
        %1075 = vmatpush.bf16.msra.mxu0 %v1013
        %1076 = vmatpush.bf16.msra.mxu0 %v1011
        %1077 = vmatpush.bf16.msra.mxu0 %v1009
        %1078 = vmatpush.bf16.msra.mxu0 %v1007
        %1079 = vmatmul.bf16.gmra.mxu0 %v901
        %v1080 = vpop.f32.mrf.mxu0
        %v1081 = vadd.f32 0.0, %v1080
        %v1082 = vpop.f32.mrf.mxu0
        %1083 = vdwg.mxu0
        %1084 = vmatpush.bf16.msra.mxu0 %v1037
        %1085 = vmatpush.bf16.msra.mxu0 %v1035
        %1086 = vmatpush.bf16.msra.mxu0 %v1033
        %1087 = vmatpush.bf16.msra.mxu0 %v1031
        %1088 = vmatpush.bf16.msra.mxu0 %v1029
        %1089 = vmatpush.bf16.msra.mxu0 %v1027
        %1090 = vmatpush.bf16.msra.mxu0 %v1025
        %1091 = vmatpush.bf16.msra.mxu0 %v1023
        %1092 = vmatmul.bf16.gmra.mxu0 %v908
        %v1093 = vpop.f32.mrf.mxu0
        %v1094 = vadd.f32 %v1081, %v1093
        %v1095 = vpop.f32.mrf.mxu0
        %1096 = vdwg.mxu0
        %1097 = vmatpush.bf16.msra.mxu0 %v1022
        %1098 = vmatpush.bf16.msra.mxu0 %v1020
        %1099 = vmatpush.bf16.msra.mxu0 %v1018
        %1100 = vmatpush.bf16.msra.mxu0 %v1016
        %1101 = vmatpush.bf16.msra.mxu0 %v1014
        %1102 = vmatpush.bf16.msra.mxu0 %v1012
        %1103 = vmatpush.bf16.msra.mxu0 %v1010
        %1104 = vmatpush.bf16.msra.mxu0 %v1008
        %1105 = vmatmul.bf16.gmra.mxu0 %v901
        %v1106 = vpop.f32.mrf.mxu0
        %v1107 = vadd.f32 0.0, %v1106
        %v1108 = vpop.f32.mrf.mxu0
        %1109 = vdwg.mxu0
        %1110 = vmatpush.bf16.msra.mxu0 %v1038
        %1111 = vmatpush.bf16.msra.mxu0 %v1036
        %1112 = vmatpush.bf16.msra.mxu0 %v1034
        %1113 = vmatpush.bf16.msra.mxu0 %v1032
        %1114 = vmatpush.bf16.msra.mxu0 %v1030
        %1115 = vmatpush.bf16.msra.mxu0 %v1028
        %1116 = vmatpush.bf16.msra.mxu0 %v1026
        %1117 = vmatpush.bf16.msra.mxu0 %v1024
        %1118 = vmatmul.bf16.gmra.mxu0 %v908
        %v1119 = vpop.f32.mrf.mxu0
        %v1120 = vadd.f32 %v1107, %v1119
        %v1121 = vpop.f32.mrf.mxu0
        %1122 = vdwg.mxu0
        %v1155 = vunpack.c.l.b16 %v824
        %v1156 = vunpack.c.h.b16 %v824
        %v1157 = vunpack.c.l.b16 %v825
        %v1158 = vunpack.c.h.b16 %v825
        %v1159 = vunpack.c.l.b16 %v826
        %v1160 = vunpack.c.h.b16 %v826
        %v1161 = vunpack.c.l.b16 %v827
        %v1162 = vunpack.c.h.b16 %v827
        %v1163 = vunpack.c.l.b16 %v828
        %v1164 = vunpack.c.h.b16 %v828
        %v1165 = vunpack.c.l.b16 %v829
        %v1166 = vunpack.c.h.b16 %v829
        %v1167 = vunpack.c.l.b16 %v830
        %v1168 = vunpack.c.h.b16 %v830
        %v1169 = vunpack.c.l.b16 %v831
        %v1170 = vunpack.c.h.b16 %v831
        %v1171 = vunpack.c.l.b16 %v832
        %v1172 = vunpack.c.h.b16 %v832
        %v1173 = vunpack.c.l.b16 %v833
        %v1174 = vunpack.c.h.b16 %v833
        %v1175 = vunpack.c.l.b16 %v834
        %v1176 = vunpack.c.h.b16 %v834
        %v1177 = vunpack.c.l.b16 %v835
        %v1178 = vunpack.c.h.b16 %v835
        %v1179 = vunpack.c.l.b16 %v836
        %v1180 = vunpack.c.h.b16 %v836
        %v1181 = vunpack.c.l.b16 %v837
        %v1182 = vunpack.c.h.b16 %v837
        %v1183 = vunpack.c.l.b16 %v838
        %v1184 = vunpack.c.h.b16 %v838
        %v1185 = vunpack.c.l.b16 %v839
        %v1186 = vunpack.c.h.b16 %v839
        %v1187 = vunpack.c.l.b16 %v840
        %v1188 = vunpack.c.h.b16 %v840
        %v1189 = vunpack.c.l.b16 %v841
        %v1190 = vunpack.c.h.b16 %v841
        %v1191 = vunpack.c.l.b16 %v842
        %v1192 = vunpack.c.h.b16 %v842
        %v1193 = vunpack.c.l.b16 %v843
        %v1194 = vunpack.c.h.b16 %v843
        %v1195 = vunpack.c.l.b16 %v844
        %v1196 = vunpack.c.h.b16 %v844
        %v1197 = vunpack.c.l.b16 %v845
        %v1198 = vunpack.c.h.b16 %v845
        %v1199 = vunpack.c.l.b16 %v846
        %v1200 = vunpack.c.h.b16 %v846
        %v1201 = vunpack.c.l.b16 %v847
        %v1202 = vunpack.c.h.b16 %v847
        %v1203 = vunpack.c.l.b16 %v848
        %v1204 = vunpack.c.h.b16 %v848
        %v1205 = vunpack.c.l.b16 %v849
        %v1206 = vunpack.c.h.b16 %v849
        %v1207 = vunpack.c.l.b16 %v850
        %v1208 = vunpack.c.h.b16 %v850
        %v1209 = vunpack.c.l.b16 %v851
        %v1210 = vunpack.c.h.b16 %v851
        %v1211 = vunpack.c.l.b16 %v852
        %v1212 = vunpack.c.h.b16 %v852
        %v1213 = vunpack.c.l.b16 %v853
        %v1214 = vunpack.c.h.b16 %v853
        %v1215 = vunpack.c.l.b16 %v854
        %v1216 = vunpack.c.h.b16 %v854
        %v1217 = vunpack.c.l.b16 %v855
        %v1218 = vunpack.c.h.b16 %v855
        %v1219 = vpack.c.b16 %v1157, %v1155
        %v1220 = vpack.c.b16 %v1158, %v1156
        %v1221 = vpack.c.b16 %v1161, %v1159
        %v1222 = vpack.c.b16 %v1162, %v1160
        %v1223 = vpack.c.b16 %v1165, %v1163
        %v1224 = vpack.c.b16 %v1166, %v1164
        %v1225 = vpack.c.b16 %v1169, %v1167
        %v1226 = vpack.c.b16 %v1170, %v1168
        %v1227 = vpack.c.b16 %v1173, %v1171
        %v1228 = vpack.c.b16 %v1174, %v1172
        %v1229 = vpack.c.b16 %v1177, %v1175
        %v1230 = vpack.c.b16 %v1178, %v1176
        %v1231 = vpack.c.b16 %v1181, %v1179
        %v1232 = vpack.c.b16 %v1182, %v1180
        %v1233 = vpack.c.b16 %v1185, %v1183
        %v1234 = vpack.c.b16 %v1186, %v1184
        %v1235 = vpack.c.b16 %v1189, %v1187
        %v1236 = vpack.c.b16 %v1190, %v1188
        %v1237 = vpack.c.b16 %v1193, %v1191
        %v1238 = vpack.c.b16 %v1194, %v1192
        %v1239 = vpack.c.b16 %v1197, %v1195
        %v1240 = vpack.c.b16 %v1198, %v1196
        %v1241 = vpack.c.b16 %v1201, %v1199
        %v1242 = vpack.c.b16 %v1202, %v1200
        %v1243 = vpack.c.b16 %v1205, %v1203
        %v1244 = vpack.c.b16 %v1206, %v1204
        %v1245 = vpack.c.b16 %v1209, %v1207
        %v1246 = vpack.c.b16 %v1210, %v1208
        %v1247 = vpack.c.b16 %v1213, %v1211
        %v1248 = vpack.c.b16 %v1214, %v1212
        %v1249 = vpack.c.b16 %v1217, %v1215
        %v1250 = vpack.c.b16 %v1218, %v1216
        %1283 = vmatpush.bf16.msra.mxu0 %v1233
        %1284 = vmatpush.bf16.msra.mxu0 %v1231
        %1285 = vmatpush.bf16.msra.mxu0 %v1229
        %1286 = vmatpush.bf16.msra.mxu0 %v1227
        %1287 = vmatpush.bf16.msra.mxu0 %v1225
        %1288 = vmatpush.bf16.msra.mxu0 %v1223
        %1289 = vmatpush.bf16.msra.mxu0 %v1221
        %1290 = vmatpush.bf16.msra.mxu0 %v1219
        %1291 = vmatmul.bf16.gmra.mxu0 %v822
        %v1292 = vpop.f32.mrf.mxu0
        %v1293 = vadd.f32 %v1094, %v1292
        %v1294 = vpop.f32.mrf.mxu0
        %1295 = vdwg.mxu0
        %1296 = vmatpush.bf16.msra.mxu0 %v1249
        %1297 = vmatpush.bf16.msra.mxu0 %v1247
        %1298 = vmatpush.bf16.msra.mxu0 %v1245
        %1299 = vmatpush.bf16.msra.mxu0 %v1243
        %1300 = vmatpush.bf16.msra.mxu0 %v1241
        %1301 = vmatpush.bf16.msra.mxu0 %v1239
        %1302 = vmatpush.bf16.msra.mxu0 %v1237
        %1303 = vmatpush.bf16.msra.mxu0 %v1235
        %1304 = vmatmul.bf16.gmra.mxu0 %v823
        %v1305 = vpop.f32.mrf.mxu0
        %v1306 = vadd.f32 %v1293, %v1305
        %v1307 = vpop.f32.mrf.mxu0
        %1308 = vdwg.mxu0
        %1309 = vmatpush.bf16.msra.mxu0 %v1234
        %1310 = vmatpush.bf16.msra.mxu0 %v1232
        %1311 = vmatpush.bf16.msra.mxu0 %v1230
        %1312 = vmatpush.bf16.msra.mxu0 %v1228
        %1313 = vmatpush.bf16.msra.mxu0 %v1226
        %1314 = vmatpush.bf16.msra.mxu0 %v1224
        %1315 = vmatpush.bf16.msra.mxu0 %v1222
        %1316 = vmatpush.bf16.msra.mxu0 %v1220
        %1317 = vmatmul.bf16.gmra.mxu0 %v822
        %v1318 = vpop.f32.mrf.mxu0
        %v1319 = vadd.f32 %v1120, %v1318
        %v1320 = vpop.f32.mrf.mxu0
        %1321 = vdwg.mxu0
        %1322 = vmatpush.bf16.msra.mxu0 %v1250
        %1323 = vmatpush.bf16.msra.mxu0 %v1248
        %1324 = vmatpush.bf16.msra.mxu0 %v1246
        %1325 = vmatpush.bf16.msra.mxu0 %v1244
        %1326 = vmatpush.bf16.msra.mxu0 %v1242
        %1327 = vmatpush.bf16.msra.mxu0 %v1240
        %1328 = vmatpush.bf16.msra.mxu0 %v1238
        %1329 = vmatpush.bf16.msra.mxu0 %v1236
        %1330 = vmatmul.bf16.gmra.mxu0 %v823
        %v1331 = vpop.f32.mrf.mxu0
        %v1332 = vadd.f32 %v1319, %v1331
        %v1333 = vpop.f32.mrf.mxu0
        %1334 = vdwg.mxu0
        %v1335 = vld [vmem:[#allocation3] sm:$0xfc]
        %v1336 = vld [vmem:[#allocation3 + $0x8] sm:$0xfc]
        %v1337 = vld [vmem:[#allocation3 + $0x10] sm:$0x3]
        %v1338 = vld [vmem:[#allocation3 + $0x18] sm:$0x3]
        %v1339 = vpack.c.bf16 %v1337, %v1335
        %v1340 = vpack.c.bf16 %v1338, %v1336
        %s1341 = scalar_lea.vmem [#allocation7], 512
        %v1342 = vld [vmem:[%s1341] sm:$0xff]
        %v1343 = vld [vmem:[%s1341 + $0x8] sm:$0xff]
        %v1344 = vld [vmem:[%s1341 + $0x10] sm:$0xff]
        %v1345 = vld [vmem:[%s1341 + $0x18] sm:$0xff]
        %v1346 = vld [vmem:[%s1341 + $0x20] sm:$0xff]
        %v1347 = vld [vmem:[%s1341 + $0x28] sm:$0xff]
        %v1348 = vld [vmem:[%s1341 + $0x30] sm:$0xff]
        %v1349 = vld [vmem:[%s1341 + $0x38] sm:$0xff]
        %v1350 = vld [vmem:[%s1341 + $0x40] sm:$0xff]
        %v1351 = vld [vmem:[%s1341 + $0x48] sm:$0xff]
        %v1352 = vld [vmem:[%s1341 + $0x50] sm:$0xff]
        %v1353 = vld [vmem:[%s1341 + $0x58] sm:$0xff]
        %v1354 = vld [vmem:[%s1341 + $0x60] sm:$0xff]
        %v1355 = vld [vmem:[%s1341 + $0x68] sm:$0xff]
        %v1356 = vld [vmem:[%s1341 + $0x70] sm:$0xff]
        %v1357 = vld [vmem:[%s1341 + $0x78] sm:$0xff]
        %v1358 = vld [vmem:[%s1341 + $0x80] sm:$0xff]
        %v1359 = vld [vmem:[%s1341 + $0x88] sm:$0xff]
        %v1360 = vld [vmem:[%s1341 + $0x90] sm:$0xff]
        %v1361 = vld [vmem:[%s1341 + $0x98] sm:$0xff]
        %v1362 = vld [vmem:[%s1341 + $0xa0] sm:$0xff]
        %v1363 = vld [vmem:[%s1341 + $0xa8] sm:$0xff]
        %v1364 = vld [vmem:[%s1341 + $0xb0] sm:$0xff]
        %v1365 = vld [vmem:[%s1341 + $0xb8] sm:$0xff]
        %v1366 = vld [vmem:[%s1341 + $0xc0] sm:$0xff]
        %v1367 = vld [vmem:[%s1341 + $0xc8] sm:$0xff]
        %v1368 = vld [vmem:[%s1341 + $0xd0] sm:$0xff]
        %v1369 = vld [vmem:[%s1341 + $0xd8] sm:$0xff]
        %v1370 = vld [vmem:[%s1341 + $0xe0] sm:$0xff]
        %v1371 = vld [vmem:[%s1341 + $0xe8] sm:$0xff]
        %v1372 = vld [vmem:[%s1341 + $0xf0] sm:$0xff]
        %v1373 = vld [vmem:[%s1341 + $0xf8] sm:$0xff]
        %v1376 = vrot.slane %v1339, 1
        %v1377 = vrot.slane %v1340, 1
        %v1412 = vunpack.c.l.b16 %v1342
        %v1413 = vunpack.c.h.b16 %v1342
        %v1414 = vunpack.c.l.b16 %v1343
        %v1415 = vunpack.c.h.b16 %v1343
        %v1416 = vunpack.c.l.b16 %v1344
        %v1417 = vunpack.c.h.b16 %v1344
        %v1418 = vunpack.c.l.b16 %v1345
        %v1419 = vunpack.c.h.b16 %v1345
        %v1420 = vunpack.c.l.b16 %v1346
        %v1421 = vunpack.c.h.b16 %v1346
        %v1422 = vunpack.c.l.b16 %v1347
        %v1423 = vunpack.c.h.b16 %v1347
        %v1424 = vunpack.c.l.b16 %v1348
        %v1425 = vunpack.c.h.b16 %v1348
        %v1426 = vunpack.c.l.b16 %v1349
        %v1427 = vunpack.c.h.b16 %v1349
        %v1428 = vunpack.c.l.b16 %v1350
        %v1429 = vunpack.c.h.b16 %v1350
        %v1430 = vunpack.c.l.b16 %v1351
        %v1431 = vunpack.c.h.b16 %v1351
        %v1432 = vunpack.c.l.b16 %v1352
        %v1433 = vunpack.c.h.b16 %v1352
        %v1434 = vunpack.c.l.b16 %v1353
        %v1435 = vunpack.c.h.b16 %v1353
        %v1436 = vunpack.c.l.b16 %v1354
        %v1437 = vunpack.c.h.b16 %v1354
        %v1438 = vunpack.c.l.b16 %v1355
        %v1439 = vunpack.c.h.b16 %v1355
        %v1440 = vunpack.c.l.b16 %v1356
        %v1441 = vunpack.c.h.b16 %v1356
        %v1442 = vunpack.c.l.b16 %v1357
        %v1443 = vunpack.c.h.b16 %v1357
        %v1444 = vunpack.c.l.b16 %v1358
        %v1445 = vunpack.c.h.b16 %v1358
        %v1446 = vunpack.c.l.b16 %v1359
        %v1447 = vunpack.c.h.b16 %v1359
        %v1448 = vunpack.c.l.b16 %v1360
        %v1449 = vunpack.c.h.b16 %v1360
        %v1450 = vunpack.c.l.b16 %v1361
        %v1451 = vunpack.c.h.b16 %v1361
        %v1452 = vunpack.c.l.b16 %v1362
        %v1453 = vunpack.c.h.b16 %v1362
        %v1454 = vunpack.c.l.b16 %v1363
        %v1455 = vunpack.c.h.b16 %v1363
        %v1456 = vunpack.c.l.b16 %v1364
        %v1457 = vunpack.c.h.b16 %v1364
        %v1458 = vunpack.c.l.b16 %v1365
        %v1459 = vunpack.c.h.b16 %v1365
        %v1460 = vunpack.c.l.b16 %v1366
        %v1461 = vunpack.c.h.b16 %v1366
        %v1462 = vunpack.c.l.b16 %v1367
        %v1463 = vunpack.c.h.b16 %v1367
        %v1464 = vunpack.c.l.b16 %v1368
        %v1465 = vunpack.c.h.b16 %v1368
        %v1466 = vunpack.c.l.b16 %v1369
        %v1467 = vunpack.c.h.b16 %v1369
        %v1468 = vunpack.c.l.b16 %v1370
        %v1469 = vunpack.c.h.b16 %v1370
        %v1470 = vunpack.c.l.b16 %v1371
        %v1471 = vunpack.c.h.b16 %v1371
        %v1472 = vunpack.c.l.b16 %v1372
        %v1473 = vunpack.c.h.b16 %v1372
        %v1474 = vunpack.c.l.b16 %v1373
        %v1475 = vunpack.c.h.b16 %v1373
        %v1476 = vpack.c.b16 %v1414, %v1412
        %v1477 = vpack.c.b16 %v1415, %v1413
        %v1478 = vpack.c.b16 %v1418, %v1416
        %v1479 = vpack.c.b16 %v1419, %v1417
        %v1480 = vpack.c.b16 %v1422, %v1420
        %v1481 = vpack.c.b16 %v1423, %v1421
        %v1482 = vpack.c.b16 %v1426, %v1424
        %v1483 = vpack.c.b16 %v1427, %v1425
        %v1484 = vpack.c.b16 %v1430, %v1428
        %v1485 = vpack.c.b16 %v1431, %v1429
        %v1486 = vpack.c.b16 %v1434, %v1432
        %v1487 = vpack.c.b16 %v1435, %v1433
        %v1488 = vpack.c.b16 %v1438, %v1436
        %v1489 = vpack.c.b16 %v1439, %v1437
        %v1490 = vpack.c.b16 %v1442, %v1440
        %v1491 = vpack.c.b16 %v1443, %v1441
        %v1492 = vpack.c.b16 %v1446, %v1444
        %v1493 = vpack.c.b16 %v1447, %v1445
        %v1494 = vpack.c.b16 %v1450, %v1448
        %v1495 = vpack.c.b16 %v1451, %v1449
        %v1496 = vpack.c.b16 %v1454, %v1452
        %v1497 = vpack.c.b16 %v1455, %v1453
        %v1498 = vpack.c.b16 %v1458, %v1456
        %v1499 = vpack.c.b16 %v1459, %v1457
        %v1500 = vpack.c.b16 %v1462, %v1460
        %v1501 = vpack.c.b16 %v1463, %v1461
        %v1502 = vpack.c.b16 %v1466, %v1464
        %v1503 = vpack.c.b16 %v1467, %v1465
        %v1504 = vpack.c.b16 %v1470, %v1468
        %v1505 = vpack.c.b16 %v1471, %v1469
        %v1506 = vpack.c.b16 %v1474, %v1472
        %v1507 = vpack.c.b16 %v1475, %v1473
        %1540 = vmatpush.bf16.msra.mxu0 %v1490
        %1541 = vmatpush.bf16.msra.mxu0 %v1488
        %1542 = vmatpush.bf16.msra.mxu0 %v1486
        %1543 = vmatpush.bf16.msra.mxu0 %v1484
        %1544 = vmatpush.bf16.msra.mxu0 %v1482
        %1545 = vmatpush.bf16.msra.mxu0 %v1480
        %1546 = vmatpush.bf16.msra.mxu0 %v1478
        %1547 = vmatpush.bf16.msra.mxu0 %v1476
        %1548 = vmatmul.bf16.gmra.mxu0 %v1376
        %v1549 = vpop.f32.mrf.mxu0
        %v1550 = vadd.f32 0.0, %v1549
        %v1551 = vpop.f32.mrf.mxu0
        %1552 = vdwg.mxu0
        %1553 = vmatpush.bf16.msra.mxu0 %v1506
        %1554 = vmatpush.bf16.msra.mxu0 %v1504
        %1555 = vmatpush.bf16.msra.mxu0 %v1502
        %1556 = vmatpush.bf16.msra.mxu0 %v1500
        %1557 = vmatpush.bf16.msra.mxu0 %v1498
        %1558 = vmatpush.bf16.msra.mxu0 %v1496
        %1559 = vmatpush.bf16.msra.mxu0 %v1494
        %1560 = vmatpush.bf16.msra.mxu0 %v1492
        %1561 = vmatmul.bf16.gmra.mxu0 %v1377
        %v1562 = vpop.f32.mrf.mxu0
        %v1563 = vadd.f32 %v1550, %v1562
        %v1564 = vpop.f32.mrf.mxu0
        %1565 = vdwg.mxu0
        %1566 = vmatpush.bf16.msra.mxu0 %v1491
        %1567 = vmatpush.bf16.msra.mxu0 %v1489
        %1568 = vmatpush.bf16.msra.mxu0 %v1487
        %1569 = vmatpush.bf16.msra.mxu0 %v1485
        %1570 = vmatpush.bf16.msra.mxu0 %v1483
        %1571 = vmatpush.bf16.msra.mxu0 %v1481
        %1572 = vmatpush.bf16.msra.mxu0 %v1479
        %1573 = vmatpush.bf16.msra.mxu0 %v1477
        %1574 = vmatmul.bf16.gmra.mxu0 %v1376
        %v1575 = vpop.f32.mrf.mxu0
        %v1576 = vadd.f32 0.0, %v1575
        %v1577 = vpop.f32.mrf.mxu0
        %1578 = vdwg.mxu0
        %1579 = vmatpush.bf16.msra.mxu0 %v1507
        %1580 = vmatpush.bf16.msra.mxu0 %v1505
        %1581 = vmatpush.bf16.msra.mxu0 %v1503
        %1582 = vmatpush.bf16.msra.mxu0 %v1501
        %1583 = vmatpush.bf16.msra.mxu0 %v1499
        %1584 = vmatpush.bf16.msra.mxu0 %v1497
        %1585 = vmatpush.bf16.msra.mxu0 %v1495
        %1586 = vmatpush.bf16.msra.mxu0 %v1493
        %1587 = vmatmul.bf16.gmra.mxu0 %v1377
        %v1588 = vpop.f32.mrf.mxu0
        %v1589 = vadd.f32 %v1576, %v1588
        %v1590 = vpop.f32.mrf.mxu0
        %1591 = vdwg.mxu0
        %v1592 = vadd.f32 %v1306, %v1563
        %v1593 = vadd.f32 %v1332, %v1589
        %v1594 = vld [vmem:[%s4] sm:$0x3]
        %v1596 = vperm.slane %v1594, 0
        %v1597 = vperm.slane %v1594, 1
        %v1600 = vadd.f32 %v1592, %v1596
        %v1601 = vadd.f32 %v1593, %v1597
        %v1602 = vld [vmem:[%s415] sm:$0xff]
        %v1603 = vpack.c.bf16 %v1602, %v1602
        %v1604 = vld [vmem:[%s5] sm:$0xff]
        %v1605 = vld [vmem:[%s5 + $0x8] sm:$0xff]
        %v1606 = vld [vmem:[%s5 + $0x10] sm:$0xff]
        %v1607 = vld [vmem:[%s5 + $0x18] sm:$0xff]
        %v1608 = vld [vmem:[%s5 + $0x20] sm:$0xff]
        %v1609 = vld [vmem:[%s5 + $0x28] sm:$0xff]
        %v1610 = vld [vmem:[%s5 + $0x30] sm:$0xff]
        %v1611 = vld [vmem:[%s5 + $0x38] sm:$0xff]
        %v1612 = vld [vmem:[%s5 + $0x40] sm:$0xff]
        %v1613 = vld [vmem:[%s5 + $0x48] sm:$0xff]
        %v1614 = vld [vmem:[%s5 + $0x50] sm:$0xff]
        %v1615 = vld [vmem:[%s5 + $0x58] sm:$0xff]
        %v1616 = vld [vmem:[%s5 + $0x60] sm:$0xff]
        %v1617 = vld [vmem:[%s5 + $0x68] sm:$0xff]
        %v1618 = vld [vmem:[%s5 + $0x70] sm:$0xff]
        %v1619 = vld [vmem:[%s5 + $0x78] sm:$0xff]
        %v1620 = vld [vmem:[%s6] sm:$0x3]
        %v1622 = vperm.slane %v1620, 0
        %v1623 = vperm.slane %v1620, 1
        %v1642 = vunpack.c.l.b16 %v1604
        %v1643 = vunpack.c.h.b16 %v1604
        %v1644 = vunpack.c.l.b16 %v1605
        %v1645 = vunpack.c.h.b16 %v1605
        %v1646 = vunpack.c.l.b16 %v1606
        %v1647 = vunpack.c.h.b16 %v1606
        %v1648 = vunpack.c.l.b16 %v1607
        %v1649 = vunpack.c.h.b16 %v1607
        %v1650 = vunpack.c.l.b16 %v1608
        %v1651 = vunpack.c.h.b16 %v1608
        %v1652 = vunpack.c.l.b16 %v1609
        %v1653 = vunpack.c.h.b16 %v1609
        %v1654 = vunpack.c.l.b16 %v1610
        %v1655 = vunpack.c.h.b16 %v1610
        %v1656 = vunpack.c.l.b16 %v1611
        %v1657 = vunpack.c.h.b16 %v1611
        %v1658 = vunpack.c.l.b16 %v1612
        %v1659 = vunpack.c.h.b16 %v1612
        %v1660 = vunpack.c.l.b16 %v1613
        %v1661 = vunpack.c.h.b16 %v1613
        %v1662 = vunpack.c.l.b16 %v1614
        %v1663 = vunpack.c.h.b16 %v1614
        %v1664 = vunpack.c.l.b16 %v1615
        %v1665 = vunpack.c.h.b16 %v1615
        %v1666 = vunpack.c.l.b16 %v1616
        %v1667 = vunpack.c.h.b16 %v1616
        %v1668 = vunpack.c.l.b16 %v1617
        %v1669 = vunpack.c.h.b16 %v1617
        %v1670 = vunpack.c.l.b16 %v1618
        %v1671 = vunpack.c.h.b16 %v1618
        %v1672 = vunpack.c.l.b16 %v1619
        %v1673 = vunpack.c.h.b16 %v1619
        %v1674 = vpack.c.b16 %v1644, %v1642
        %v1675 = vpack.c.b16 %v1645, %v1643
        %v1676 = vpack.c.b16 %v1648, %v1646
        %v1677 = vpack.c.b16 %v1649, %v1647
        %v1678 = vpack.c.b16 %v1652, %v1650
        %v1679 = vpack.c.b16 %v1653, %v1651
        %v1680 = vpack.c.b16 %v1656, %v1654
        %v1681 = vpack.c.b16 %v1657, %v1655
        %v1682 = vpack.c.b16 %v1660, %v1658
        %v1683 = vpack.c.b16 %v1661, %v1659
        %v1684 = vpack.c.b16 %v1664, %v1662
        %v1685 = vpack.c.b16 %v1665, %v1663
        %v1686 = vpack.c.b16 %v1668, %v1666
        %v1687 = vpack.c.b16 %v1669, %v1667
        %v1688 = vpack.c.b16 %v1672, %v1670
        %v1689 = vpack.c.b16 %v1673, %v1671
        %1706 = vmatpush.bf16.msra.mxu0 %v1688
        %1707 = vmatpush.bf16.msra.mxu0 %v1686
        %1708 = vmatpush.bf16.msra.mxu0 %v1684
        %1709 = vmatpush.bf16.msra.mxu0 %v1682
        %1710 = vmatpush.bf16.msra.mxu0 %v1680
        %1711 = vmatpush.bf16.msra.mxu0 %v1678
        %1712 = vmatpush.bf16.msra.mxu0 %v1676
        %1713 = vmatpush.bf16.msra.mxu0 %v1674
        %1714 = vmatmul.bf16.gmra.mxu0 %v1603
        %v1715 = vpop.f32.mrf.mxu0
        %v1716 = vadd.f32 %v1622, %v1715
        %v1717 = vpop.f32.mrf.mxu0
        %1718 = vdwg.mxu0
        %1719 = vmatpush.bf16.msra.mxu0 %v1689
        %1720 = vmatpush.bf16.msra.mxu0 %v1687
        %1721 = vmatpush.bf16.msra.mxu0 %v1685
        %1722 = vmatpush.bf16.msra.mxu0 %v1683
        %1723 = vmatpush.bf16.msra.mxu0 %v1681
        %1724 = vmatpush.bf16.msra.mxu0 %v1679
        %1725 = vmatpush.bf16.msra.mxu0 %v1677
        %1726 = vmatpush.bf16.msra.mxu0 %v1675
        %1727 = vmatmul.bf16.gmra.mxu0 %v1603
        %v1728 = vpop.f32.mrf.mxu0
        %v1729 = vadd.f32 %v1623, %v1728
        %v1730 = vpop.f32.mrf.mxu0
        %1731 = vdwg.mxu0
        %v1732 = vrot.slane %v1600, 4
        %v1733 = vadd.f32 %v1600, %v1732
        %v1734 = vrot.slane %v1733, 2
        %v1735 = vadd.f32 %v1733, %v1734
        %v1736 = vrot.slane %v1735, 1
        %v1737 = vadd.f32 %v1735, %v1736
        %v1738 = vrot.slane %v1601, 4
        %v1739 = vadd.f32 %v1601, %v1738
        %v1740 = vrot.slane %v1739, 2
        %v1741 = vadd.f32 %v1739, %v1740
        %v1742 = vrot.slane %v1741, 1
        %v1743 = vadd.f32 %v1741, %v1742
        %v1744 = vld [vmem:[%s9] sm:$0xff]
        %v1745 = vld [vmem:[%s9 + $0x8] sm:$0xff]
        %v1746 = vld [vmem:[%s9 + $0x10] sm:$0xff]
        %v1747 = vld [vmem:[%s9 + $0x18] sm:$0xff]
        %v1748 = vld [vmem:[%s9 + $0x20] sm:$0xff]
        %v1749 = vld [vmem:[%s9 + $0x28] sm:$0xff]
        %v1750 = vld [vmem:[%s9 + $0x30] sm:$0xff]
        %v1751 = vld [vmem:[%s9 + $0x38] sm:$0xff]
        %v1752 = vld [vmem:[%s9 + $0x40] sm:$0xff]
        %v1753 = vld [vmem:[%s9 + $0x48] sm:$0xff]
        %v1754 = vld [vmem:[%s9 + $0x50] sm:$0xff]
        %v1755 = vld [vmem:[%s9 + $0x58] sm:$0xff]
        %v1756 = vld [vmem:[%s9 + $0x60] sm:$0xff]
        %v1757 = vld [vmem:[%s9 + $0x68] sm:$0xff]
        %v1758 = vld [vmem:[%s9 + $0x70] sm:$0xff]
        %v1759 = vld [vmem:[%s9 + $0x78] sm:$0xff]
        %v1760 = vld [vmem:[%s9 + $0x80] sm:$0xff]
        %v1761 = vld [vmem:[%s9 + $0x88] sm:$0xff]
        %v1762 = vld [vmem:[%s9 + $0x90] sm:$0xff]
        %v1763 = vld [vmem:[%s9 + $0x98] sm:$0xff]
        %v1764 = vld [vmem:[%s9 + $0xa0] sm:$0xff]
        %v1765 = vld [vmem:[%s9 + $0xa8] sm:$0xff]
        %v1766 = vld [vmem:[%s9 + $0xb0] sm:$0xff]
        %v1767 = vld [vmem:[%s9 + $0xb8] sm:$0xff]
        %v1768 = vld [vmem:[%s9 + $0xc0] sm:$0xff]
        %v1769 = vld [vmem:[%s9 + $0xc8] sm:$0xff]
        %v1770 = vld [vmem:[%s9 + $0xd0] sm:$0xff]
        %v1771 = vld [vmem:[%s9 + $0xd8] sm:$0xff]
        %v1772 = vld [vmem:[%s9 + $0xe0] sm:$0xff]
        %v1773 = vld [vmem:[%s9 + $0xe8] sm:$0xff]
        %v1774 = vld [vmem:[%s9 + $0xf0] sm:$0xff]
        %v1775 = vld [vmem:[%s9 + $0xf8] sm:$0xff]
        %1776 = vmatpush.msra.mxu0 %v1759
        %1777 = vmatpush.msra.mxu0 %v1758
        %1778 = vmatpush.msra.mxu0 %v1757
        %1779 = vmatpush.msra.mxu0 %v1756
        %1780 = vmatpush.msra.mxu0 %v1755
        %1781 = vmatpush.msra.mxu0 %v1754
        %1782 = vmatpush.msra.mxu0 %v1753
        %1783 = vmatpush.msra.mxu0 %v1752
        %1784 = vmatpush.msra.mxu0 %v1751
        %1785 = vmatpush.msra.mxu0 %v1750
        %1786 = vmatpush.msra.mxu0 %v1749
        %1787 = vmatpush.msra.mxu0 %v1748
        %1788 = vmatpush.msra.mxu0 %v1747
        %1789 = vmatpush.msra.mxu0 %v1746
        %1790 = vmatpush.msra.mxu0 %v1745
        %1791 = vmatpush.msra.mxu0 %v1744
        %1792 = vmatmul.f32.gmra.mxu0 %v1737
        %v1793 = vpop.f32.mrf.mxu0
        %v1794 = vadd.f32 0.0, %v1793
        %1795 = vdwg.mxu0
        %1796 = vmatpush.msra.mxu0 %v1775
        %1797 = vmatpush.msra.mxu0 %v1774
        %1798 = vmatpush.msra.mxu0 %v1773
        %1799 = vmatpush.msra.mxu0 %v1772
        %1800 = vmatpush.msra.mxu0 %v1771
        %1801 = vmatpush.msra.mxu0 %v1770
        %1802 = vmatpush.msra.mxu0 %v1769
        %1803 = vmatpush.msra.mxu0 %v1768
        %1804 = vmatpush.msra.mxu0 %v1767
        %1805 = vmatpush.msra.mxu0 %v1766
        %1806 = vmatpush.msra.mxu0 %v1765
        %1807 = vmatpush.msra.mxu0 %v1764
        %1808 = vmatpush.msra.mxu0 %v1763
        %1809 = vmatpush.msra.mxu0 %v1762
        %1810 = vmatpush.msra.mxu0 %v1761
        %1811 = vmatpush.msra.mxu0 %v1760
        %1812 = vmatmul.f32.gmra.mxu0 %v1743
        %v1813 = vpop.f32.mrf.mxu0
        %v1814 = vadd.f32 %v1794, %v1813
        %1815 = vdwg.mxu0
        %v1816 = vld [vmem:[%s7] sm:$0xff]
        %v1817 = vld [vmem:[%s7 + $0x8] sm:$0xff]
        %v1818 = vld [vmem:[%s7 + $0x10] sm:$0xff]
        %v1819 = vld [vmem:[%s7 + $0x18] sm:$0xff]
        %vm1820 = vcmask 261120
        %v1822 = vsel %vm1820, %v1814, 0
        %1824 = vmatpush.msra.mxu0 0.0
        %1825 = vmatpush.msra.mxu0 0.0
        %1826 = vmatpush.msra.mxu0 0.0
        %1827 = vmatpush.msra.mxu0 0.0
        %1828 = vmatpush.msra.mxu0 0.0
        %1829 = vmatpush.msra.mxu0 0.0
        %1830 = vmatpush.msra.mxu0 0.0
        %1831 = vmatpush.msra.mxu0 0.0
        %1832 = vmatpush.msra.mxu0 0.0
        %1833 = vmatpush.msra.mxu0 0.0
        %1834 = vmatpush.msra.mxu0 0.0
        %1835 = vmatpush.msra.mxu0 0.0
        %1836 = vmatpush.msra.mxu0 %v1819
        %1837 = vmatpush.msra.mxu0 %v1818
        %1838 = vmatpush.msra.mxu0 %v1817
        %1839 = vmatpush.msra.mxu0 %v1816
        %1840 = vmatmul.f32.gmra.mxu0 %v1822
        %v1841 = vpop.f32.mrf.mxu0
        %v1842 = vadd.f32 0.0, %v1841
        %1843 = vdwg.mxu0
        %v1844 = vmax.f32 %v1842, 0.0
        %v1845 = vld [vmem:[%s8] sm:$0x3]
        %vm1846 = vcmask 15360
        %v1848 = vsel %vm1846, %v1844, 0
        %vm1850 = vcmask 1041408
        %v1852 = vsel %vm1850, %v1845, 0
        %1854 = vmatpush.msra.mxu0 0.0
        %1855 = vmatpush.msra.mxu0 0.0
        %1856 = vmatpush.msra.mxu0 0.0
        %1857 = vmatpush.msra.mxu0 0.0
        %1858 = vmatpush.msra.mxu0 0.0
        %1859 = vmatpush.msra.mxu0 0.0
        %1860 = vmatpush.msra.mxu0 0.0
        %1861 = vmatpush.msra.mxu0 0.0
        %1862 = vmatpush.msra.mxu0 0.0
        %1863 = vmatpush.msra.mxu0 0.0
        %1864 = vmatpush.msra.mxu0 0.0
        %1865 = vmatpush.msra.mxu0 0.0
        %1866 = vmatpush.msra.mxu0 0.0
        %1867 = vmatpush.msra.mxu0 0.0
        %1868 = vmatpush.msra.mxu0 0.0
        %1869 = vmatpush.msra.mxu0 %v1852
        %1870 = vmatmul.f32.gmra.mxu0 %v1848
        %v1871 = vpop.f32.mrf.mxu0
        %v1872 = vadd.f32 0.0, %v1871
        %1873 = vdwg.mxu0
        %v1874 = vsub.f32 0.0, %v1872
        %v1875 = vmul.f32 %v1874, 1.442695
        %v1876 = vpow.pop %v1875
        %v1877 = vadd.f32 %v1876, 1.0
        %v1878 = vrcp.pop %v1877
        %v1879 = vld [vmem:[%s10] sm:$0xff]
        %v1880 = vld [vmem:[%s10 + $0x8] sm:$0xff]
        %v1881 = vld [vmem:[%s10 + $0x10] sm:$0xff]
        %v1882 = vld [vmem:[%s10 + $0x18] sm:$0xff]
        %v1883 = vld [vmem:[%s10 + $0x20] sm:$0xff]
        %v1884 = vld [vmem:[%s10 + $0x28] sm:$0xff]
        %v1885 = vld [vmem:[%s10 + $0x30] sm:$0xff]
        %v1886 = vld [vmem:[%s10 + $0x38] sm:$0xff]
        %v1888 = vsel %vm1820, %v1878, 0
        %1890 = vmatpush.msra.mxu0 0.0
        %1891 = vmatpush.msra.mxu0 0.0
        %1892 = vmatpush.msra.mxu0 0.0
        %1893 = vmatpush.msra.mxu0 0.0
        %1894 = vmatpush.msra.mxu0 0.0
        %1895 = vmatpush.msra.mxu0 0.0
        %1896 = vmatpush.msra.mxu0 0.0
        %1897 = vmatpush.msra.mxu0 0.0
        %1898 = vmatpush.msra.mxu0 0.0
        %1899 = vmatpush.msra.mxu0 0.0
        %1900 = vmatpush.msra.mxu0 0.0
        %1901 = vmatpush.msra.mxu0 0.0
        %1902 = vmatpush.msra.mxu0 %v1885
        %1903 = vmatpush.msra.mxu0 %v1883
        %1904 = vmatpush.msra.mxu0 %v1881
        %1905 = vmatpush.msra.mxu0 %v1879
        %1906 = vmatmul.f32.gmra.mxu0 %v1888
        %v1907 = vpop.f32.mrf.mxu0
        %v1908 = vadd.f32 0.0, %v1907
        %1909 = vdwg.mxu0
        %1910 = vmatpush.msra.mxu0 0.0
        %1911 = vmatpush.msra.mxu0 0.0
        %1912 = vmatpush.msra.mxu0 0.0
        %1913 = vmatpush.msra.mxu0 0.0
        %1914 = vmatpush.msra.mxu0 0.0
        %1915 = vmatpush.msra.mxu0 0.0
        %1916 = vmatpush.msra.mxu0 0.0
        %1917 = vmatpush.msra.mxu0 0.0
        %1918 = vmatpush.msra.mxu0 0.0
        %1919 = vmatpush.msra.mxu0 0.0
        %1920 = vmatpush.msra.mxu0 0.0
        %1921 = vmatpush.msra.mxu0 0.0
        %1922 = vmatpush.msra.mxu0 %v1886
        %1923 = vmatpush.msra.mxu0 %v1884
        %1924 = vmatpush.msra.mxu0 %v1882
        %1925 = vmatpush.msra.mxu0 %v1880
        %1926 = vmatmul.f32.gmra.mxu0 %v1888
        %v1927 = vpop.f32.mrf.mxu0
        %v1928 = vadd.f32 0.0, %v1927
        %1929 = vdwg.mxu0
        %v1930 = vperm.slane %v1908, 0
        %v1931 = vperm.slane %v1928, 0
        %v1932 = vmul.f32 %v1600, %v1930
        %v1933 = vmul.f32 %v1601, %v1931
        %v1934 = vadd.f32 %v1932, %v1716
        %v1935 = vadd.f32 %v1933, %v1729
        %v1936 = vmax.f32 %v1934, 0.0
        %v1937 = vmax.f32 %v1935, 0.0
        %1938 = vst [vmem:[%s411] sm:$0xff] %v1936
        %1939 = vst [vmem:[%s411 + $0x8] sm:$0xff] %v1937
        %s1940 = sand.u32 %s271, 1
        %s1941 = scalar_lea.sflag [#allocation6], %s1940
        %s1942 = sand.u32 %s271, 1
        %s1943 = smul.addr %s1942, 16
        %s1944 = scalar_lea.vmem [#allocation9], %s1943
        // Predicated region
        $region73: #{tpu_custom_call.1} parent=63 // pred_check
          %p1945 = pneg %p281
        $region74: #{tpu_custom_call.1} parent=63 // pred_check_branch
          %1947 = sbr.rel (%p1945) target = $region76
        $region75: #{tpu_custom_call.1} parent=63 // pred_region
          %1949 = vsyncadd %s1941, 0
          %s1950 = smul.addr %s27, 2
          %s1951 = smul.addr %s1950, 8
          %s1952 = scalar_lea.hbm %s11, %s1951
          %s1954 = sshll.u32 %s1944, 4
          %s1955 = int_to_ptr.vmem [resolvable:$true] %s1954
          %s1956 = sshll.u32 %s1952, 4
          %s1957 = int_to_ptr.hbm [resolvable:$true] %s1956
          %1959 = dma.vmem_to_hbm [thread:$0]  %s1955, 256, %s1957, %s1941
        $region76: #{tpu_custom_call.1} parent=63 // pred_fallthru
          _
      $region64: #{tpu_custom_call.1} parent=5 // pred_fallthru
        _
      %p1960 = scmp.le.s32.totalorder 2, %s22
      // Predicated region
      $region77: #{tpu_custom_call.1} parent=5 // pred_check
        %p1961 = pneg %p1960
      $region78: #{tpu_custom_call.1} parent=5 // pred_check_branch
        %1963 = sbr.rel (%p1961) target = $region80
      $region79: #{tpu_custom_call.1} parent=5 // pred_region
        %s1964 = ssub.s32 %s22, 2
        // Predicated region
        $region81: #{tpu_custom_call.1} parent=79 // pred_check
          %p1965 = pneg %p287
        $region82: #{tpu_custom_call.1} parent=79 // pred_check_branch
          %1967 = sbr.rel (%p1965) target = $region84
        $region83: #{tpu_custom_call.1} parent=79 // pred_region
          %s1968 = sand.u32 %s272, 1
          %s1969 = scalar_lea.sflag [#allocation6], %s1968
          %s1970 = sand.u32 %s272, 1
          %s1971 = smul.addr %s1970, 16
          %s1972 = scalar_lea.vmem [#allocation9], %s1971
          %1974 = dma.done %s1969, 256
        $region84: #{tpu_custom_call.1} parent=79 // pred_fallthru
          _
      $region80: #{tpu_custom_call.1} parent=5 // pred_fallthru
        _
    $region6: #{tpu_custom_call.1} parent=1 // loop_footer
      %s26 = sadd.s32 1, %s22
    $region7: #{tpu_custom_call.1} parent=1 // loop_footer_branch
      %21 = sbr.rel target = $region3
    $region8: #{tpu_custom_call.1} parent=1 // loop_exit
      _
    %1975 = vsyncpa [#allocation5], 1
    %s1976 = scalar_lea.sflag [#allocation5], 1
    %1977 = vsyncpa %s1976, 1
    %1978 = vsyncpa [#allocation8], 1
    %1979 = vsyncpa [#allocation6], 1
    %s1980 = scalar_lea.sflag [#allocation6], 1
    %1981 = vsyncpa %s1980, 1

</llo_original>
